<compile_context>
chip_gen: v5e
topology: v5e:2x2
jax: 0.10.0
libtpu: 0.0.40
codegen_flags: <defaults>
</compile_context>

<pallas_src>
import jax
import jax.numpy as jnp
from jax.experimental import pallas as pl
from jax.experimental.pallas import tpu as pltpu


def _fishnet_block_kernel(x_ref, w1_ref, t1_ref, w2_ref, t2_ref, out_ref,
                          xp_scr, mid_scr):
    # x_ref  : (nb, H, W*Cin)      f32  lane-dense input (also the residual)
    # w1_ref : (3, W*Cin, W*Cout)  bf16 banded conv1 weights (BN1 scale folded)
    # t1_ref : (1, W*Cout)         f32  BN1 shift (tiled over W)
    # w2_ref : (3, W*Cout, W*Cout) bf16 banded conv2 weights (BN2 scale folded)
    # t2_ref : (1, W*Cout)         f32  BN2 shift (tiled over W)
    # out_ref: (nb, H, W*Cout)     f32
    # xp_scr : (nb*(H+2), W*Cin)   bf16 VMEM stacked, row-padded input
    # mid_scr: (nb*(H+2), W*Cout)  bf16 VMEM stacked, row-padded intermediate
    nb, H, wci = x_ref.shape
    wco = out_ref.shape[2]
    Hp = xp_scr.shape[0] // nb          # H + 2 (1-row zero halo per sample)
    M = nb * Hp - 2                     # stacked matmul M dimension

    # Stage the whole batch chunk into one padded bf16 LHS (cast once).  Row
    # halos are re-zeroed every grid step (cheap) so the kernel stays correct
    # when the "parallel" batch axis is split across TensorCores -- a
    # program_id==0 init would only ever run on one core.
    zi = jnp.zeros((1, wci), xp_scr.dtype)
    zo = jnp.zeros((1, wco), mid_scr.dtype)
    for n in range(nb):
        base = n * Hp
        xp_scr[base:base + 1, :] = zi
        xp_scr[base + Hp - 1:base + Hp, :] = zi
        mid_scr[base:base + 1, :] = zo
        mid_scr[base + Hp - 1:base + Hp, :] = zo
        xp_scr[base + 1:base + 1 + H, :] = x_ref[n].astype(xp_scr.dtype)

    t1 = t1_ref[...]
    t2 = t2_ref[...]

    # ---- conv1 (+ folded BN1 scale): 3 row-shifted MXU matmuls over the whole
    # stacked batch.  M = nb*(H+2)-2, K = W*Cin, N = W*Cout.
    acc = jnp.dot(xp_scr[0:M, :], w1_ref[0], preferred_element_type=jnp.float32)
    for kh in (1, 2):
        acc = acc + jnp.dot(xp_scr[kh:kh + M, :], w1_ref[kh],
                            preferred_element_type=jnp.float32)
    # BN1 shift + ReLU in f32, single cast to bf16 for conv2's LHS.
    mid = jnp.maximum(acc + t1, 0.0).astype(mid_scr.dtype)

    # Re-pad the intermediate: only each sample's H valid rows are copied; the
    # rows of `mid` straddling sample boundaries are garbage and are dropped
    # (the halo rows of mid_scr stay zero).
    for n in range(nb):
        base = n * Hp
        mid_scr[base + 1:base + 1 + H, :] = mid[base:base + H, :]

    # ---- conv2 (+ folded BN2 scale)
    acc2 = jnp.dot(mid_scr[0:M, :], w2_ref[0], preferred_element_type=jnp.float32)
    for kh in (1, 2):
        acc2 = acc2 + jnp.dot(mid_scr[kh:kh + M, :], w2_ref[kh],
                              preferred_element_type=jnp.float32)
    y = acc2 + t2

    # ---- BN2 shift + identity residual + ReLU (f32, lane-dense stores).  The
    # residual is re-loaded from x_ref here instead of being held live across
    # both conv matmul chains.
    for n in range(nb):
        base = n * Hp
        out_ref[n] = jnp.maximum(y[base:base + H, :] + x_ref[n],
                                 0.0).astype(out_ref.dtype)


def _banded_conv_weights(w_hwio, W):
    """(3,3,Ci,Co) HWIO conv weights -> (3, W*Ci, W*Co) banded matrices.

    Built against the UNPADDED lane layout: for output column w, the kw taps
    that would read column w-1 < 0 or w+1 >= W are left at zero inside the
    weight matrix (this implements the W-direction zero padding), so

        out[h] = sum_kh row_padded[h + kh] @ B[kh]

    where row_padded is the input with a single zero row above and below.
    """
    _, _, Ci, Co = w_hwio.shape
    B = jnp.zeros((3, W * Ci, W * Co), w_hwio.dtype)
    for kh in range(3):
        for kw in range(3):
            for w in range(W):
                wi = w + kw - 1
                if 0 <= wi < W:
                    B = B.at[kh, wi * Ci:(wi + 1) * Ci,
                             w * Co:(w + 1) * Co].set(w_hwio[kh, kw])
    return B


def fishnet_block_pallas(x_nhwc, params, *, nb=8):
    """x_nhwc: (N, H, W, C) float32 -> (N, H, W, C) float32.

    nb samples are processed per grid step; pick nb so that nb*(H+2) ~ 128 on
    v5e and ~256 on v6e/v7x, and so that N//nb is even on v7x (2 TensorCores).
    """
    N, H, W, Cin = x_nhwc.shape
    Cout = params["t1d"].shape[1] // W
    assert Cin == Cout, "identity residual requires inplanes == planes"
    assert N % nb == 0, "nb must divide the batch"
    # Lane-density precondition: otherwise every store degrades to masked
    # vst.msk (documented ~4.5x store-path penalty) without any warning.
    assert (W * Cin) % 128 == 0 and (W * Cout) % 128 == 0, \
        "W*Cin and W*Cout must be multiples of 128 for lane-dense I/O"
    Hp = H + 2

    x_dense = x_nhwc.reshape(N, H, W * Cin)          # free (metadata-only) reshape

    out_dense = pl.pallas_call(
        _fishnet_block_kernel,
        # TODO(synk): emit bf16 output here if the consuming block accepts it
        # (halves output HBM traffic and store-slot pressure, esp. on v5e).
        out_shape=jax.ShapeDtypeStruct((N, H, W * Cout), x_nhwc.dtype),
        grid_spec=pltpu.PrefetchScalarGridSpec(
            num_scalar_prefetch=0,
            grid=(N // nb,),
            in_specs=[
                pl.BlockSpec((nb, H, W * Cin), lambda b: (b, 0, 0)),          # x
                pl.BlockSpec((3, W * Cin, W * Cout), lambda b: (0, 0, 0)),    # w1 banded
                pl.BlockSpec((1, W * Cout), lambda b: (0, 0)),                # t1
                pl.BlockSpec((3, W * Cout, W * Cout), lambda b: (0, 0, 0)),   # w2 banded
                pl.BlockSpec((1, W * Cout), lambda b: (0, 0)),                # t2
            ],
            out_specs=pl.BlockSpec((nb, H, W * Cout), lambda b: (b, 0, 0)),
            scratch_shapes=[
                pltpu.VMEM((nb * Hp, W * Cin), jnp.bfloat16),
                pltpu.VMEM((nb * Hp, W * Cout), jnp.bfloat16),
            ],
        ),
        compiler_params=pltpu.CompilerParams(
            dimension_semantics=("parallel",)),
    )(x_dense, params["w1b"], params["t1d"], params["w2b"], params["t2d"])

    return out_dense.reshape(N, H, W, Cout)


def fishnet_block_nchw(x_nchw, params, *, nb=8):
    """PyTorch-facing wrapper: NCHW in, NCHW out."""
    x_nhwc = jnp.transpose(x_nchw, (0, 2, 3, 1))
    y_nhwc = fishnet_block_pallas(x_nhwc, params, nb=nb)
    return jnp.transpose(y_nhwc, (0, 3, 1, 2))


# ----------------------------- references (pure JAX) -----------------------------
def _conv3x3_ref(x_nhwc, w_hwio, bias):
    y = jax.lax.conv_general_dilated(
        x_nhwc, w_hwio, window_strides=(1, 1), padding=((1, 1), (1, 1)),
        dimension_numbers=("NHWC", "HWIO", "NHWC"))
    return y + bias.reshape(1, 1, 1, -1)


def basic_block_ref_f32(x_nhwc, raw):
    eps = 1e-5
    out = _conv3x3_ref(x_nhwc, raw["w1"], raw["b1"])
    out = (out - raw["m1"]) / jnp.sqrt(raw["v1"] + eps) * raw["g1"] + raw["be1"]
    out = jnp.maximum(out, 0.0)
    out = _conv3x3_ref(out, raw["w2"], raw["b2"])
    out = (out - raw["m2"]) / jnp.sqrt(raw["v2"] + eps) * raw["g2"] + raw["be2"]
    out = out + x_nhwc
    return jnp.maximum(out, 0.0)


def basic_block_ref_bf16(x_nhwc, raw):
    """Reference with the same bf16-MXU / f32-accumulate numerics as the kernel."""
    eps = 1e-5
    s1 = raw["g1"] / jnp.sqrt(raw["v1"] + eps)
    t1 = (raw["b1"] - raw["m1"]) * s1 + raw["be1"]
    s2 = raw["g2"] / jnp.sqrt(raw["v2"] + eps)
    t2 = (raw["b2"] - raw["m2"]) * s2 + raw["be2"]
    w1f = (raw["w1"] * s1.reshape(1, 1, 1, -1)).astype(jnp.bfloat16)
    w2f = (raw["w2"] * s2.reshape(1, 1, 1, -1)).astype(jnp.bfloat16)

    def conv(x, w):
        return jax.lax.conv_general_dilated(
            x, w, window_strides=(1, 1), padding=((1, 1), (1, 1)),
            dimension_numbers=("NHWC", "HWIO", "NHWC"),
            preferred_element_type=jnp.float32)

    out = conv(x_nhwc.astype(jnp.bfloat16), w1f) + t1.reshape(1, 1, 1, -1)
    out = jnp.maximum(out, 0.0)
    out = conv(out.astype(jnp.bfloat16), w2f) + t2.reshape(1, 1, 1, -1)
    return jnp.maximum(out + x_nhwc, 0.0)


def make_params(key, cin, cout, W):
    """Random BasicBlock parameters + kernel-ready folded / banded versions."""
    eps = 1e-5
    ks = jax.random.split(key, 10)
    raw = dict(
        w1=jax.random.normal(ks[0], (3, 3, cin, cout), jnp.float32) * 0.1,
        b1=jax.random.normal(ks[1], (cout,), jnp.float32) * 0.1,
        g1=1.0 + 0.1 * jax.random.normal(ks[2], (cout,), jnp.float32),
        be1=0.1 * jax.random.normal(ks[3], (cout,), jnp.float32),
        m1=0.1 * jax.random.normal(ks[4], (cout,), jnp.float32),
        v1=jnp.abs(jax.random.normal(ks[5], (cout,), jnp.float32)) + 0.5,
        w2=jax.random.normal(ks[6], (3, 3, cout, cout), jnp.float32) * 0.1,
        b2=jax.random.normal(ks[7], (cout,), jnp.float32) * 0.1,
        g2=1.0 + 0.1 * jax.random.normal(ks[8], (cout,), jnp.float32),
        be2=0.1 * jax.random.normal(ks[9], (cout,), jnp.float32),
        m2=jnp.zeros((cout,), jnp.float32),
        v2=jnp.ones((cout,), jnp.float32),
    )
    # Fold conv bias + inference-mode BN:  bn(conv(x,w)+b) == conv(x, w*s) + t
    s1 = raw["g1"] / jnp.sqrt(raw["v1"] + eps)
    t1 = (raw["b1"] - raw["m1"]) * s1 + raw["be1"]
    s2 = raw["g2"] / jnp.sqrt(raw["v2"] + eps)
    t2 = (raw["b2"] - raw["m2"]) * s2 + raw["be2"]
    w1f = raw["w1"] * s1.reshape(1, 1, 1, cout)
    w2f = raw["w2"] * s2.reshape(1, 1, 1, cout)
    params = dict(
        w1b=_banded_conv_weights(w1f, W).astype(jnp.bfloat16),
        w2b=_banded_conv_weights(w2f, W).astype(jnp.bfloat16),
        t1d=jnp.tile(t1, W).reshape(1, W * cout),
        t2d=jnp.tile(t2, W).reshape(1, W * cout),
    )
    return params, raw


if __name__ == "__main__":
    # Shapes consistent with BasicBlock(inplanes=8, planes=8), NCHW input.
    # W*C = 128 -> every load/store in the kernel is fully lane-dense.
    # N=64, nb=8 -> grid of 8 "parallel" steps (4 per TensorCore on v7x) and
    # M = nb*(H+2)-2 = 142 MXU rows per matmul.
    N, C, Hs, Ws = 64, 8, 16, 16
    key = jax.random.PRNGKey(0)
    kx, kp = jax.random.split(key)
    x_nchw = jax.random.normal(kx, (N, C, Hs, Ws), jnp.float32)

    params, raw = make_params(kp, C, C, Ws)

    y = jax.block_until_ready(fishnet_block_nchw(x_nchw, params, nb=8))
    assert y.shape == (N, C, Hs, Ws)

    x_nhwc = jnp.transpose(x_nchw, (0, 2, 3, 1))
    y_nhwc = jnp.transpose(y, (0, 2, 3, 1))

    # Tight check vs. a reference with matching bf16-MXU / f32-accumulate numerics.
    y_bref = basic_block_ref_bf16(x_nhwc, raw)
    err_b = float(jnp.max(jnp.abs(y_nhwc - y_bref)))
    assert jnp.allclose(y_nhwc, y_bref, atol=1e-3, rtol=1e-3), err_b

    # Looser sanity check vs. the exact f32 reference (slack is bf16 MXU inputs).
    y_fref = basic_block_ref_f32(x_nhwc, raw)
    err_f = float(jnp.max(jnp.abs(y_nhwc - y_fref)))
    assert jnp.allclose(y_nhwc, y_fref, atol=5e-2, rtol=5e-2), err_f

    print("KERNEL_OK")
</pallas_src>

<mosaic_0001>
module attributes {stable_mosaic.version = 11 : i64} {
  func.func @_fishnet_block_kernel(%arg0: i32, %arg1: memref<8x16x128xf32, #tpu.memory_space<vmem>>, %arg2: memref<3x128x128xbf16, #tpu.memory_space<vmem>>, %arg3: memref<1x128xf32, #tpu.memory_space<vmem>>, %arg4: memref<3x128x128xbf16, #tpu.memory_space<vmem>>, %arg5: memref<1x128xf32, #tpu.memory_space<vmem>>, %arg6: memref<8x16x128xf32, #tpu.memory_space<vmem>>, %arg7: memref<144x128xbf16, #tpu.memory_space<vmem>>, %arg8: memref<144x128xbf16, #tpu.memory_space<vmem>>) attributes {dimension_semantics = [#tpu.dimension_semantics<parallel>], iteration_bounds = array<i64: 8>, scalar_prefetch = 0 : i64, scratch_operands = 2 : i64, tpu.core_type = #tpu.core_type<tc>, window_params = [{transform_indices = @transform_0, window_bounds = array<i64: 8, 16, 128>}, {pipeline_mode = #tpu.pipeline_mode<synchronous>, transform_indices = @transform_1, window_bounds = array<i64: 3, 128, 128>}, {pipeline_mode = #tpu.pipeline_mode<synchronous>, transform_indices = @transform_2, window_bounds = array<i64: 1, 128>}, {pipeline_mode = #tpu.pipeline_mode<synchronous>, transform_indices = @transform_3, window_bounds = array<i64: 3, 128, 128>}, {pipeline_mode = #tpu.pipeline_mode<synchronous>, transform_indices = @transform_4, window_bounds = array<i64: 1, 128>}, {transform_indices = @transform_5, window_bounds = array<i64: 8, 16, 128>}]} {
    %cst = arith.constant 0.000000e+00 : bf16
    %0 = vector.broadcast %cst : bf16 to vector<1x128xbf16>
    %cst_0 = arith.constant 0.000000e+00 : bf16
    %1 = vector.broadcast %cst_0 : bf16 to vector<1x128xbf16>
    %c0 = arith.constant 0 : index
    %c0_1 = arith.constant 0 : index
    %2 = vector.load %arg7[%c0, %c0_1] : memref<144x128xbf16, #tpu.memory_space<vmem>>, vector<1x128xbf16>
    tpu.vector_store %arg7[%c0, %c0_1], %0 {strides = array<i32>} : memref<144x128xbf16, #tpu.memory_space<vmem>>, vector<1x128xbf16>,
    %c17 = arith.constant 17 : index
    %c0_2 = arith.constant 0 : index
    %3 = vector.load %arg7[%c17, %c0_2] : memref<144x128xbf16, #tpu.memory_space<vmem>>, vector<1x128xbf16>
    tpu.vector_store %arg7[%c17, %c0_2], %0 {strides = array<i32>} : memref<144x128xbf16, #tpu.memory_space<vmem>>, vector<1x128xbf16>,
    %c0_3 = arith.constant 0 : index
    %c0_4 = arith.constant 0 : index
    %4 = vector.load %arg8[%c0_3, %c0_4] : memref<144x128xbf16, #tpu.memory_space<vmem>>, vector<1x128xbf16>
    tpu.vector_store %arg8[%c0_3, %c0_4], %1 {strides = array<i32>} : memref<144x128xbf16, #tpu.memory_space<vmem>>, vector<1x128xbf16>,
    %c17_5 = arith.constant 17 : index
    %c0_6 = arith.constant 0 : index
    %5 = vector.load %arg8[%c17_5, %c0_6] : memref<144x128xbf16, #tpu.memory_space<vmem>>, vector<1x128xbf16>
    tpu.vector_store %arg8[%c17_5, %c0_6], %1 {strides = array<i32>} : memref<144x128xbf16, #tpu.memory_space<vmem>>, vector<1x128xbf16>,
    %c0_7 = arith.constant 0 : index
    %c0_8 = arith.constant 0 : index
    %c0_9 = arith.constant 0 : index
    %6 = vector.load %arg1[%c0_7, %c0_8, %c0_9] : memref<8x16x128xf32, #tpu.memory_space<vmem>>, vector<1x16x128xf32>
    %7 = vector.shape_cast %6 : vector<1x16x128xf32> to vector<16x128xf32>
    %8 = arith.truncf %7 : vector<16x128xf32> to vector<16x128xbf16>
    %c1 = arith.constant 1 : index
    %c0_10 = arith.constant 0 : index
    %9 = vector.load %arg7[%c1, %c0_10] : memref<144x128xbf16, #tpu.memory_space<vmem>>, vector<16x128xbf16>
    tpu.vector_store %arg7[%c1, %c0_10], %8 {strides = array<i32>} : memref<144x128xbf16, #tpu.memory_space<vmem>>, vector<16x128xbf16>,
    %c18 = arith.constant 18 : index
    %c0_11 = arith.constant 0 : index
    %10 = vector.load %arg7[%c18, %c0_11] : memref<144x128xbf16, #tpu.memory_space<vmem>>, vector<1x128xbf16>
    tpu.vector_store %arg7[%c18, %c0_11], %0 {strides = array<i32>} : memref<144x128xbf16, #tpu.memory_space<vmem>>, vector<1x128xbf16>,
    %c35 = arith.constant 35 : index
    %c0_12 = arith.constant 0 : index
    %11 = vector.load %arg7[%c35, %c0_12] : memref<144x128xbf16, #tpu.memory_space<vmem>>, vector<1x128xbf16>
    tpu.vector_store %arg7[%c35, %c0_12], %0 {strides = array<i32>} : memref<144x128xbf16, #tpu.memory_space<vmem>>, vector<1x128xbf16>,
    %c18_13 = arith.constant 18 : index
    %c0_14 = arith.constant 0 : index
    %12 = vector.load %arg8[%c18_13, %c0_14] : memref<144x128xbf16, #tpu.memory_space<vmem>>, vector<1x128xbf16>
    tpu.vector_store %arg8[%c18_13, %c0_14], %1 {strides = array<i32>} : memref<144x128xbf16, #tpu.memory_space<vmem>>, vector<1x128xbf16>,
    %c35_15 = arith.constant 35 : index
    %c0_16 = arith.constant 0 : index
    %13 = vector.load %arg8[%c35_15, %c0_16] : memref<144x128xbf16, #tpu.memory_space<vmem>>, vector<1x128xbf16>
    tpu.vector_store %arg8[%c35_15, %c0_16], %1 {strides = array<i32>} : memref<144x128xbf16, #tpu.memory_space<vmem>>, vector<1x128xbf16>,
    %c1_17 = arith.constant 1 : index
    %c0_18 = arith.constant 0 : index
    %c0_19 = arith.constant 0 : index
    %14 = vector.load %arg1[%c1_17, %c0_18, %c0_19] : memref<8x16x128xf32, #tpu.memory_space<vmem>>, vector<1x16x128xf32>
    %15 = vector.shape_cast %14 : vector<1x16x128xf32> to vector<16x128xf32>
    %16 = arith.truncf %15 : vector<16x128xf32> to vector<16x128xbf16>
    %c19 = arith.constant 19 : index
    %c0_20 = arith.constant 0 : index
    %17 = vector.load %arg7[%c19, %c0_20] : memref<144x128xbf16, #tpu.memory_space<vmem>>, vector<16x128xbf16>
    tpu.vector_store %arg7[%c19, %c0_20], %16 {strides = array<i32>} : memref<144x128xbf16, #tpu.memory_space<vmem>>, vector<16x128xbf16>,
    %c36 = arith.constant 36 : index
    %c0_21 = arith.constant 0 : index
    %18 = vector.load %arg7[%c36, %c0_21] : memref<144x128xbf16, #tpu.memory_space<vmem>>, vector<1x128xbf16>
    tpu.vector_store %arg7[%c36, %c0_21], %0 {strides = array<i32>} : memref<144x128xbf16, #tpu.memory_space<vmem>>, vector<1x128xbf16>,
    %c53 = arith.constant 53 : index
    %c0_22 = arith.constant 0 : index
    %19 = vector.load %arg7[%c53, %c0_22] : memref<144x128xbf16, #tpu.memory_space<vmem>>, vector<1x128xbf16>
    tpu.vector_store %arg7[%c53, %c0_22], %0 {strides = array<i32>} : memref<144x128xbf16, #tpu.memory_space<vmem>>, vector<1x128xbf16>,
    %c36_23 = arith.constant 36 : index
    %c0_24 = arith.constant 0 : index
    %20 = vector.load %arg8[%c36_23, %c0_24] : memref<144x128xbf16, #tpu.memory_space<vmem>>, vector<1x128xbf16>
    tpu.vector_store %arg8[%c36_23, %c0_24], %1 {strides = array<i32>} : memref<144x128xbf16, #tpu.memory_space<vmem>>, vector<1x128xbf16>,
    %c53_25 = arith.constant 53 : index
    %c0_26 = arith.constant 0 : index
    %21 = vector.load %arg8[%c53_25, %c0_26] : memref<144x128xbf16, #tpu.memory_space<vmem>>, vector<1x128xbf16>
    tpu.vector_store %arg8[%c53_25, %c0_26], %1 {strides = array<i32>} : memref<144x128xbf16, #tpu.memory_space<vmem>>, vector<1x128xbf16>,
    %c2 = arith.constant 2 : index
    %c0_27 = arith.constant 0 : index
    %c0_28 = arith.constant 0 : index
    %22 = vector.load %arg1[%c2, %c0_27, %c0_28] : memref<8x16x128xf32, #tpu.memory_space<vmem>>, vector<1x16x128xf32>
    %23 = vector.shape_cast %22 : vector<1x16x128xf32> to vector<16x128xf32>
    %24 = arith.truncf %23 : vector<16x128xf32> to vector<16x128xbf16>
    %c37 = arith.constant 37 : index
    %c0_29 = arith.constant 0 : index
    %25 = vector.load %arg7[%c37, %c0_29] : memref<144x128xbf16, #tpu.memory_space<vmem>>, vector<16x128xbf16>
    tpu.vector_store %arg7[%c37, %c0_29], %24 {strides = array<i32>} : memref<144x128xbf16, #tpu.memory_space<vmem>>, vector<16x128xbf16>,
    %c54 = arith.constant 54 : index
    %c0_30 = arith.constant 0 : index
    %26 = vector.load %arg7[%c54, %c0_30] : memref<144x128xbf16, #tpu.memory_space<vmem>>, vector<1x128xbf16>
    tpu.vector_store %arg7[%c54, %c0_30], %0 {strides = array<i32>} : memref<144x128xbf16, #tpu.memory_space<vmem>>, vector<1x128xbf16>,
    %c71 = arith.constant 71 : index
    %c0_31 = arith.constant 0 : index
    %27 = vector.load %arg7[%c71, %c0_31] : memref<144x128xbf16, #tpu.memory_space<vmem>>, vector<1x128xbf16>
    tpu.vector_store %arg7[%c71, %c0_31], %0 {strides = array<i32>} : memref<144x128xbf16, #tpu.memory_space<vmem>>, vector<1x128xbf16>,
    %c54_32 = arith.constant 54 : index
    %c0_33 = arith.constant 0 : index
    %28 = vector.load %arg8[%c54_32, %c0_33] : memref<144x128xbf16, #tpu.memory_space<vmem>>, vector<1x128xbf16>
    tpu.vector_store %arg8[%c54_32, %c0_33], %1 {strides = array<i32>} : memref<144x128xbf16, #tpu.memory_space<vmem>>, vector<1x128xbf16>,
    %c71_34 = arith.constant 71 : index
    %c0_35 = arith.constant 0 : index
    %29 = vector.load %arg8[%c71_34, %c0_35] : memref<144x128xbf16, #tpu.memory_space<vmem>>, vector<1x128xbf16>
    tpu.vector_store %arg8[%c71_34, %c0_35], %1 {strides = array<i32>} : memref<144x128xbf16, #tpu.memory_space<vmem>>, vector<1x128xbf16>,
    %c3 = arith.constant 3 : index
    %c0_36 = arith.constant 0 : index
    %c0_37 = arith.constant 0 : index
    %30 = vector.load %arg1[%c3, %c0_36, %c0_37] : memref<8x16x128xf32, #tpu.memory_space<vmem>>, vector<1x16x128xf32>
    %31 = vector.shape_cast %30 : vector<1x16x128xf32> to vector<16x128xf32>
    %32 = arith.truncf %31 : vector<16x128xf32> to vector<16x128xbf16>
    %c55 = arith.constant 55 : index
    %c0_38 = arith.constant 0 : index
    %33 = vector.load %arg7[%c55, %c0_38] : memref<144x128xbf16, #tpu.memory_space<vmem>>, vector<16x128xbf16>
    tpu.vector_store %arg7[%c55, %c0_38], %32 {strides = array<i32>} : memref<144x128xbf16, #tpu.memory_space<vmem>>, vector<16x128xbf16>,
    %c72 = arith.constant 72 : index
    %c0_39 = arith.constant 0 : index
    %34 = vector.load %arg7[%c72, %c0_39] : memref<144x128xbf16, #tpu.memory_space<vmem>>, vector<1x128xbf16>
    tpu.vector_store %arg7[%c72, %c0_39], %0 {strides = array<i32>} : memref<144x128xbf16, #tpu.memory_space<vmem>>, vector<1x128xbf16>,
    %c89 = arith.constant 89 : index
    %c0_40 = arith.constant 0 : index
    %35 = vector.load %arg7[%c89, %c0_40] : memref<144x128xbf16, #tpu.memory_space<vmem>>, vector<1x128xbf16>
    tpu.vector_store %arg7[%c89, %c0_40], %0 {strides = array<i32>} : memref<144x128xbf16, #tpu.memory_space<vmem>>, vector<1x128xbf16>,
    %c72_41 = arith.constant 72 : index
    %c0_42 = arith.constant 0 : index
    %36 = vector.load %arg8[%c72_41, %c0_42] : memref<144x128xbf16, #tpu.memory_space<vmem>>, vector<1x128xbf16>
    tpu.vector_store %arg8[%c72_41, %c0_42], %1 {strides = array<i32>} : memref<144x128xbf16, #tpu.memory_space<vmem>>, vector<1x128xbf16>,
    %c89_43 = arith.constant 89 : index
    %c0_44 = arith.constant 0 : index
    %37 = vector.load %arg8[%c89_43, %c0_44] : memref<144x128xbf16, #tpu.memory_space<vmem>>, vector<1x128xbf16>
    tpu.vector_store %arg8[%c89_43, %c0_44], %1 {strides = array<i32>} : memref<144x128xbf16, #tpu.memory_space<vmem>>, vector<1x128xbf16>,
    %c4 = arith.constant 4 : index
    %c0_45 = arith.constant 0 : index
    %c0_46 = arith.constant 0 : index
    %38 = vector.load %arg1[%c4, %c0_45, %c0_46] : memref<8x16x128xf32, #tpu.memory_space<vmem>>, vector<1x16x128xf32>
    %39 = vector.shape_cast %38 : vector<1x16x128xf32> to vector<16x128xf32>
    %40 = arith.truncf %39 : vector<16x128xf32> to vector<16x128xbf16>
    %c73 = arith.constant 73 : index
    %c0_47 = arith.constant 0 : index
    %41 = vector.load %arg7[%c73, %c0_47] : memref<144x128xbf16, #tpu.memory_space<vmem>>, vector<16x128xbf16>
    tpu.vector_store %arg7[%c73, %c0_47], %40 {strides = array<i32>} : memref<144x128xbf16, #tpu.memory_space<vmem>>, vector<16x128xbf16>,
    %c90 = arith.constant 90 : index
    %c0_48 = arith.constant 0 : index
    %42 = vector.load %arg7[%c90, %c0_48] : memref<144x128xbf16, #tpu.memory_space<vmem>>, vector<1x128xbf16>
    tpu.vector_store %arg7[%c90, %c0_48], %0 {strides = array<i32>} : memref<144x128xbf16, #tpu.memory_space<vmem>>, vector<1x128xbf16>,
    %c107 = arith.constant 107 : index
    %c0_49 = arith.constant 0 : index
    %43 = vector.load %arg7[%c107, %c0_49] : memref<144x128xbf16, #tpu.memory_space<vmem>>, vector<1x128xbf16>
    tpu.vector_store %arg7[%c107, %c0_49], %0 {strides = array<i32>} : memref<144x128xbf16, #tpu.memory_space<vmem>>, vector<1x128xbf16>,
    %c90_50 = arith.constant 90 : index
    %c0_51 = arith.constant 0 : index
    %44 = vector.load %arg8[%c90_50, %c0_51] : memref<144x128xbf16, #tpu.memory_space<vmem>>, vector<1x128xbf16>
    tpu.vector_store %arg8[%c90_50, %c0_51], %1 {strides = array<i32>} : memref<144x128xbf16, #tpu.memory_space<vmem>>, vector<1x128xbf16>,
    %c107_52 = arith.constant 107 : index
    %c0_53 = arith.constant 0 : index
    %45 = vector.load %arg8[%c107_52, %c0_53] : memref<144x128xbf16, #tpu.memory_space<vmem>>, vector<1x128xbf16>
    tpu.vector_store %arg8[%c107_52, %c0_53], %1 {strides = array<i32>} : memref<144x128xbf16, #tpu.memory_space<vmem>>, vector<1x128xbf16>,
    %c5 = arith.constant 5 : index
    %c0_54 = arith.constant 0 : index
    %c0_55 = arith.constant 0 : index
    %46 = vector.load %arg1[%c5, %c0_54, %c0_55] : memref<8x16x128xf32, #tpu.memory_space<vmem>>, vector<1x16x128xf32>
    %47 = vector.shape_cast %46 : vector<1x16x128xf32> to vector<16x128xf32>
    %48 = arith.truncf %47 : vector<16x128xf32> to vector<16x128xbf16>
    %c91 = arith.constant 91 : index
    %c0_56 = arith.constant 0 : index
    %49 = vector.load %arg7[%c91, %c0_56] : memref<144x128xbf16, #tpu.memory_space<vmem>>, vector<16x128xbf16>
    tpu.vector_store %arg7[%c91, %c0_56], %48 {strides = array<i32>} : memref<144x128xbf16, #tpu.memory_space<vmem>>, vector<16x128xbf16>,
    %c108 = arith.constant 108 : index
    %c0_57 = arith.constant 0 : index
    %50 = vector.load %arg7[%c108, %c0_57] : memref<144x128xbf16, #tpu.memory_space<vmem>>, vector<1x128xbf16>
    tpu.vector_store %arg7[%c108, %c0_57], %0 {strides = array<i32>} : memref<144x128xbf16, #tpu.memory_space<vmem>>, vector<1x128xbf16>,
    %c125 = arith.constant 125 : index
    %c0_58 = arith.constant 0 : index
    %51 = vector.load %arg7[%c125, %c0_58] : memref<144x128xbf16, #tpu.memory_space<vmem>>, vector<1x128xbf16>
    tpu.vector_store %arg7[%c125, %c0_58], %0 {strides = array<i32>} : memref<144x128xbf16, #tpu.memory_space<vmem>>, vector<1x128xbf16>,
    %c108_59 = arith.constant 108 : index
    %c0_60 = arith.constant 0 : index
    %52 = vector.load %arg8[%c108_59, %c0_60] : memref<144x128xbf16, #tpu.memory_space<vmem>>, vector<1x128xbf16>
    tpu.vector_store %arg8[%c108_59, %c0_60], %1 {strides = array<i32>} : memref<144x128xbf16, #tpu.memory_space<vmem>>, vector<1x128xbf16>,
    %c125_61 = arith.constant 125 : index
    %c0_62 = arith.constant 0 : index
    %53 = vector.load %arg8[%c125_61, %c0_62] : memref<144x128xbf16, #tpu.memory_space<vmem>>, vector<1x128xbf16>
    tpu.vector_store %arg8[%c125_61, %c0_62], %1 {strides = array<i32>} : memref<144x128xbf16, #tpu.memory_space<vmem>>, vector<1x128xbf16>,
    %c6 = arith.constant 6 : index
    %c0_63 = arith.constant 0 : index
    %c0_64 = arith.constant 0 : index
    %54 = vector.load %arg1[%c6, %c0_63, %c0_64] : memref<8x16x128xf32, #tpu.memory_space<vmem>>, vector<1x16x128xf32>
    %55 = vector.shape_cast %54 : vector<1x16x128xf32> to vector<16x128xf32>
    %56 = arith.truncf %55 : vector<16x128xf32> to vector<16x128xbf16>
    %c109 = arith.constant 109 : index
    %c0_65 = arith.constant 0 : index
    %57 = vector.load %arg7[%c109, %c0_65] : memref<144x128xbf16, #tpu.memory_space<vmem>>, vector<16x128xbf16>
    tpu.vector_store %arg7[%c109, %c0_65], %56 {strides = array<i32>} : memref<144x128xbf16, #tpu.memory_space<vmem>>, vector<16x128xbf16>,
    %c126 = arith.constant 126 : index
    %c0_66 = arith.constant 0 : index
    %58 = vector.load %arg7[%c126, %c0_66] : memref<144x128xbf16, #tpu.memory_space<vmem>>, vector<1x128xbf16>
    tpu.vector_store %arg7[%c126, %c0_66], %0 {strides = array<i32>} : memref<144x128xbf16, #tpu.memory_space<vmem>>, vector<1x128xbf16>,
    %c143 = arith.constant 143 : index
    %c0_67 = arith.constant 0 : index
    %59 = vector.load %arg7[%c143, %c0_67] : memref<144x128xbf16, #tpu.memory_space<vmem>>, vector<1x128xbf16>
    tpu.vector_store %arg7[%c143, %c0_67], %0 {strides = array<i32>} : memref<144x128xbf16, #tpu.memory_space<vmem>>, vector<1x128xbf16>,
    %c126_68 = arith.constant 126 : index
    %c0_69 = arith.constant 0 : index
    %60 = vector.load %arg8[%c126_68, %c0_69] : memref<144x128xbf16, #tpu.memory_space<vmem>>, vector<1x128xbf16>
    tpu.vector_store %arg8[%c126_68, %c0_69], %1 {strides = array<i32>} : memref<144x128xbf16, #tpu.memory_space<vmem>>, vector<1x128xbf16>,
    %c143_70 = arith.constant 143 : index
    %c0_71 = arith.constant 0 : index
    %61 = vector.load %arg8[%c143_70, %c0_71] : memref<144x128xbf16, #tpu.memory_space<vmem>>, vector<1x128xbf16>
    tpu.vector_store %arg8[%c143_70, %c0_71], %1 {strides = array<i32>} : memref<144x128xbf16, #tpu.memory_space<vmem>>, vector<1x128xbf16>,
    %c7 = arith.constant 7 : index
    %c0_72 = arith.constant 0 : index
    %c0_73 = arith.constant 0 : index
    %62 = vector.load %arg1[%c7, %c0_72, %c0_73] : memref<8x16x128xf32, #tpu.memory_space<vmem>>, vector<1x16x128xf32>
    %63 = vector.shape_cast %62 : vector<1x16x128xf32> to vector<16x128xf32>
    %64 = arith.truncf %63 : vector<16x128xf32> to vector<16x128xbf16>
    %c127 = arith.constant 127 : index
    %c0_74 = arith.constant 0 : index
    %65 = vector.load %arg7[%c127, %c0_74] : memref<144x128xbf16, #tpu.memory_space<vmem>>, vector<16x128xbf16>
    tpu.vector_store %arg7[%c127, %c0_74], %64 {strides = array<i32>} : memref<144x128xbf16, #tpu.memory_space<vmem>>, vector<16x128xbf16>,
    %c0_75 = arith.constant 0 : index
    %c0_76 = arith.constant 0 : index
    %66 = vector.load %arg3[%c0_75, %c0_76] : memref<1x128xf32, #tpu.memory_space<vmem>>, vector<1x128xf32>
    %c0_77 = arith.constant 0 : index
    %c0_78 = arith.constant 0 : index
    %67 = vector.load %arg5[%c0_77, %c0_78] : memref<1x128xf32, #tpu.memory_space<vmem>>, vector<1x128xf32>
    %c0_79 = arith.constant 0 : index
    %c0_80 = arith.constant 0 : index
    %68 = vector.load %arg7[%c0_79, %c0_80] : memref<144x128xbf16, #tpu.memory_space<vmem>>, vector<142x128xbf16>
    %c0_81 = arith.constant 0 : index
    %c0_82 = arith.constant 0 : index
    %c0_83 = arith.constant 0 : index
    %69 = vector.load %arg2[%c0_81, %c0_82, %c0_83] : memref<3x128x128xbf16, #tpu.memory_space<vmem>>, vector<1x128x128xbf16>
    %70 = vector.shape_cast %69 : vector<1x128x128xbf16> to vector<128x128xbf16>
    %cst_84 = arith.constant dense<0.000000e+00> : vector<142x128xf32>
    %71 = tpu.matmul %68, %70, %cst_84 {dimension_numbers = #tpu.dot_dimension_numbers<[1], [0], [0], [1], [0, 0, 1, 1], [], []>} : vector<142x128xbf16>, vector<128x128xbf16>, vector<142x128xf32> -> vector<142x128xf32>
    %c1_85 = arith.constant 1 : index
    %c0_86 = arith.constant 0 : index
    %72 = vector.load %arg7[%c1_85, %c0_86] : memref<144x128xbf16, #tpu.memory_space<vmem>>, vector<142x128xbf16>
    %c1_87 = arith.constant 1 : index
    %c0_88 = arith.constant 0 : index
    %c0_89 = arith.constant 0 : index
    %73 = vector.load %arg2[%c1_87, %c0_88, %c0_89] : memref<3x128x128xbf16, #tpu.memory_space<vmem>>, vector<1x128x128xbf16>
    %74 = vector.shape_cast %73 : vector<1x128x128xbf16> to vector<128x128xbf16>
    %cst_90 = arith.constant dense<0.000000e+00> : vector<142x128xf32>
    %75 = tpu.matmul %72, %74, %cst_90 {dimension_numbers = #tpu.dot_dimension_numbers<[1], [0], [0], [1], [0, 0, 1, 1], [], []>} : vector<142x128xbf16>, vector<128x128xbf16>, vector<142x128xf32> -> vector<142x128xf32>
    %76 = arith.addf %71, %75 : vector<142x128xf32>
    %c2_91 = arith.constant 2 : index
    %c0_92 = arith.constant 0 : index
    %77 = vector.load %arg7[%c2_91, %c0_92] : memref<144x128xbf16, #tpu.memory_space<vmem>>, vector<142x128xbf16>
    %c2_93 = arith.constant 2 : index
    %c0_94 = arith.constant 0 : index
    %c0_95 = arith.constant 0 : index
    %78 = vector.load %arg2[%c2_93, %c0_94, %c0_95] : memref<3x128x128xbf16, #tpu.memory_space<vmem>>, vector<1x128x128xbf16>
    %79 = vector.shape_cast %78 : vector<1x128x128xbf16> to vector<128x128xbf16>
    %cst_96 = arith.constant dense<0.000000e+00> : vector<142x128xf32>
    %80 = tpu.matmul %77, %79, %cst_96 {dimension_numbers = #tpu.dot_dimension_numbers<[1], [0], [0], [1], [0, 0, 1, 1], [], []>} : vector<142x128xbf16>, vector<128x128xbf16>, vector<142x128xf32> -> vector<142x128xf32>
    %81 = arith.addf %76, %80 : vector<142x128xf32>
    %82 = vector.broadcast %66 : vector<1x128xf32> to vector<142x128xf32>
    %83 = arith.addf %81, %82 : vector<142x128xf32>
    %cst_97 = arith.constant 0.000000e+00 : f32
    %84 = vector.broadcast %cst_97 : f32 to vector<142x128xf32>
    %85 = arith.maximumf %83, %84 : vector<142x128xf32>
    %86 = arith.truncf %85 : vector<142x128xf32> to vector<142x128xbf16>
    %87 = vector.extract_strided_slice %86 {offsets = [0, 0], sizes = [16, 128], strides = [1, 1]} : vector<142x128xbf16> to vector<16x128xbf16>
    %c1_98 = arith.constant 1 : index
    %c0_99 = arith.constant 0 : index
    %88 = vector.load %arg8[%c1_98, %c0_99] : memref<144x128xbf16, #tpu.memory_space<vmem>>, vector<16x128xbf16>
    tpu.vector_store %arg8[%c1_98, %c0_99], %87 {strides = array<i32>} : memref<144x128xbf16, #tpu.memory_space<vmem>>, vector<16x128xbf16>,
    %89 = vector.extract_strided_slice %86 {offsets = [18, 0], sizes = [16, 128], strides = [1, 1]} : vector<142x128xbf16> to vector<16x128xbf16>
    %c19_100 = arith.constant 19 : index
    %c0_101 = arith.constant 0 : index
    %90 = vector.load %arg8[%c19_100, %c0_101] : memref<144x128xbf16, #tpu.memory_space<vmem>>, vector<16x128xbf16>
    tpu.vector_store %arg8[%c19_100, %c0_101], %89 {strides = array<i32>} : memref<144x128xbf16, #tpu.memory_space<vmem>>, vector<16x128xbf16>,
    %91 = vector.extract_strided_slice %86 {offsets = [36, 0], sizes = [16, 128], strides = [1, 1]} : vector<142x128xbf16> to vector<16x128xbf16>
    %c37_102 = arith.constant 37 : index
    %c0_103 = arith.constant 0 : index
    %92 = vector.load %arg8[%c37_102, %c0_103] : memref<144x128xbf16, #tpu.memory_space<vmem>>, vector<16x128xbf16>
    tpu.vector_store %arg8[%c37_102, %c0_103], %91 {strides = array<i32>} : memref<144x128xbf16, #tpu.memory_space<vmem>>, vector<16x128xbf16>,
    %93 = vector.extract_strided_slice %86 {offsets = [54, 0], sizes = [16, 128], strides = [1, 1]} : vector<142x128xbf16> to vector<16x128xbf16>
    %c55_104 = arith.constant 55 : index
    %c0_105 = arith.constant 0 : index
    %94 = vector.load %arg8[%c55_104, %c0_105] : memref<144x128xbf16, #tpu.memory_space<vmem>>, vector<16x128xbf16>
    tpu.vector_store %arg8[%c55_104, %c0_105], %93 {strides = array<i32>} : memref<144x128xbf16, #tpu.memory_space<vmem>>, vector<16x128xbf16>,
    %95 = vector.extract_strided_slice %86 {offsets = [72, 0], sizes = [16, 128], strides = [1, 1]} : vector<142x128xbf16> to vector<16x128xbf16>
    %c73_106 = arith.constant 73 : index
    %c0_107 = arith.constant 0 : index
    %96 = vector.load %arg8[%c73_106, %c0_107] : memref<144x128xbf16, #tpu.memory_space<vmem>>, vector<16x128xbf16>
    tpu.vector_store %arg8[%c73_106, %c0_107], %95 {strides = array<i32>} : memref<144x128xbf16, #tpu.memory_space<vmem>>, vector<16x128xbf16>,
    %97 = vector.extract_strided_slice %86 {offsets = [90, 0], sizes = [16, 128], strides = [1, 1]} : vector<142x128xbf16> to vector<16x128xbf16>
    %c91_108 = arith.constant 91 : index
    %c0_109 = arith.constant 0 : index
    %98 = vector.load %arg8[%c91_108, %c0_109] : memref<144x128xbf16, #tpu.memory_space<vmem>>, vector<16x128xbf16>
    tpu.vector_store %arg8[%c91_108, %c0_109], %97 {strides = array<i32>} : memref<144x128xbf16, #tpu.memory_space<vmem>>, vector<16x128xbf16>,
    %99 = vector.extract_strided_slice %86 {offsets = [108, 0], sizes = [16, 128], strides = [1, 1]} : vector<142x128xbf16> to vector<16x128xbf16>
    %c109_110 = arith.constant 109 : index
    %c0_111 = arith.constant 0 : index
    %100 = vector.load %arg8[%c109_110, %c0_111] : memref<144x128xbf16, #tpu.memory_space<vmem>>, vector<16x128xbf16>
    tpu.vector_store %arg8[%c109_110, %c0_111], %99 {strides = array<i32>} : memref<144x128xbf16, #tpu.memory_space<vmem>>, vector<16x128xbf16>,
    %101 = vector.extract_strided_slice %86 {offsets = [126, 0], sizes = [16, 128], strides = [1, 1]} : vector<142x128xbf16> to vector<16x128xbf16>
    %c127_112 = arith.constant 127 : index
    %c0_113 = arith.constant 0 : index
    %102 = vector.load %arg8[%c127_112, %c0_113] : memref<144x128xbf16, #tpu.memory_space<vmem>>, vector<16x128xbf16>
    tpu.vector_store %arg8[%c127_112, %c0_113], %101 {strides = array<i32>} : memref<144x128xbf16, #tpu.memory_space<vmem>>, vector<16x128xbf16>,
    %c0_114 = arith.constant 0 : index
    %c0_115 = arith.constant 0 : index
    %103 = vector.load %arg8[%c0_114, %c0_115] : memref<144x128xbf16, #tpu.memory_space<vmem>>, vector<142x128xbf16>
    %c0_116 = arith.constant 0 : index
    %c0_117 = arith.constant 0 : index
    %c0_118 = arith.constant 0 : index
    %104 = vector.load %arg4[%c0_116, %c0_117, %c0_118] : memref<3x128x128xbf16, #tpu.memory_space<vmem>>, vector<1x128x128xbf16>
    %105 = vector.shape_cast %104 : vector<1x128x128xbf16> to vector<128x128xbf16>
    %cst_119 = arith.constant dense<0.000000e+00> : vector<142x128xf32>
    %106 = tpu.matmul %103, %105, %cst_119 {dimension_numbers = #tpu.dot_dimension_numbers<[1], [0], [0], [1], [0, 0, 1, 1], [], []>} : vector<142x128xbf16>, vector<128x128xbf16>, vector<142x128xf32> -> vector<142x128xf32>
    %c1_120 = arith.constant 1 : index
    %c0_121 = arith.constant 0 : index
    %107 = vector.load %arg8[%c1_120, %c0_121] : memref<144x128xbf16, #tpu.memory_space<vmem>>, vector<142x128xbf16>
    %c1_122 = arith.constant 1 : index
    %c0_123 = arith.constant 0 : index
    %c0_124 = arith.constant 0 : index
    %108 = vector.load %arg4[%c1_122, %c0_123, %c0_124] : memref<3x128x128xbf16, #tpu.memory_space<vmem>>, vector<1x128x128xbf16>
    %109 = vector.shape_cast %108 : vector<1x128x128xbf16> to vector<128x128xbf16>
    %cst_125 = arith.constant dense<0.000000e+00> : vector<142x128xf32>
    %110 = tpu.matmul %107, %109, %cst_125 {dimension_numbers = #tpu.dot_dimension_numbers<[1], [0], [0], [1], [0, 0, 1, 1], [], []>} : vector<142x128xbf16>, vector<128x128xbf16>, vector<142x128xf32> -> vector<142x128xf32>
    %111 = arith.addf %106, %110 : vector<142x128xf32>
    %c2_126 = arith.constant 2 : index
    %c0_127 = arith.constant 0 : index
    %112 = vector.load %arg8[%c2_126, %c0_127] : memref<144x128xbf16, #tpu.memory_space<vmem>>, vector<142x128xbf16>
    %c2_128 = arith.constant 2 : index
    %c0_129 = arith.constant 0 : index
    %c0_130 = arith.constant 0 : index
    %113 = vector.load %arg4[%c2_128, %c0_129, %c0_130] : memref<3x128x128xbf16, #tpu.memory_space<vmem>>, vector<1x128x128xbf16>
    %114 = vector.shape_cast %113 : vector<1x128x128xbf16> to vector<128x128xbf16>
    %cst_131 = arith.constant dense<0.000000e+00> : vector<142x128xf32>
    %115 = tpu.matmul %112, %114, %cst_131 {dimension_numbers = #tpu.dot_dimension_numbers<[1], [0], [0], [1], [0, 0, 1, 1], [], []>} : vector<142x128xbf16>, vector<128x128xbf16>, vector<142x128xf32> -> vector<142x128xf32>
    %116 = arith.addf %111, %115 : vector<142x128xf32>
    %117 = vector.broadcast %67 : vector<1x128xf32> to vector<142x128xf32>
    %118 = arith.addf %116, %117 : vector<142x128xf32>
    %119 = vector.extract_strided_slice %118 {offsets = [0, 0], sizes = [16, 128], strides = [1, 1]} : vector<142x128xf32> to vector<16x128xf32>
    %c0_132 = arith.constant 0 : index
    %c0_133 = arith.constant 0 : index
    %c0_134 = arith.constant 0 : index
    %120 = vector.load %arg1[%c0_132, %c0_133, %c0_134] : memref<8x16x128xf32, #tpu.memory_space<vmem>>, vector<1x16x128xf32>
    %121 = vector.shape_cast %120 : vector<1x16x128xf32> to vector<16x128xf32>
    %122 = arith.addf %119, %121 : vector<16x128xf32>
    %cst_135 = arith.constant 0.000000e+00 : f32
    %123 = vector.broadcast %cst_135 : f32 to vector<16x128xf32>
    %124 = arith.maximumf %122, %123 : vector<16x128xf32>
    %c0_136 = arith.constant 0 : index
    %c0_137 = arith.constant 0 : index
    %c0_138 = arith.constant 0 : index
    %125 = vector.load %arg6[%c0_136, %c0_137, %c0_138] : memref<8x16x128xf32, #tpu.memory_space<vmem>>, vector<1x16x128xf32>
    %126 = vector.shape_cast %125 : vector<1x16x128xf32> to vector<16x128xf32>
    %127 = vector.shape_cast %124 : vector<16x128xf32> to vector<1x16x128xf32>
    tpu.vector_store %arg6[%c0_136, %c0_137, %c0_138], %127 {strides = array<i32>} : memref<8x16x128xf32, #tpu.memory_space<vmem>>, vector<1x16x128xf32>,
    %128 = vector.extract_strided_slice %118 {offsets = [18, 0], sizes = [16, 128], strides = [1, 1]} : vector<142x128xf32> to vector<16x128xf32>
    %c1_139 = arith.constant 1 : index
    %c0_140 = arith.constant 0 : index
    %c0_141 = arith.constant 0 : index
    %129 = vector.load %arg1[%c1_139, %c0_140, %c0_141] : memref<8x16x128xf32, #tpu.memory_space<vmem>>, vector<1x16x128xf32>
    %130 = vector.shape_cast %129 : vector<1x16x128xf32> to vector<16x128xf32>
    %131 = arith.addf %128, %130 : vector<16x128xf32>
    %cst_142 = arith.constant 0.000000e+00 : f32
    %132 = vector.broadcast %cst_142 : f32 to vector<16x128xf32>
    %133 = arith.maximumf %131, %132 : vector<16x128xf32>
    %c1_143 = arith.constant 1 : index
    %c0_144 = arith.constant 0 : index
    %c0_145 = arith.constant 0 : index
    %134 = vector.load %arg6[%c1_143, %c0_144, %c0_145] : memref<8x16x128xf32, #tpu.memory_space<vmem>>, vector<1x16x128xf32>
    %135 = vector.shape_cast %134 : vector<1x16x128xf32> to vector<16x128xf32>
    %136 = vector.shape_cast %133 : vector<16x128xf32> to vector<1x16x128xf32>
    tpu.vector_store %arg6[%c1_143, %c0_144, %c0_145], %136 {strides = array<i32>} : memref<8x16x128xf32, #tpu.memory_space<vmem>>, vector<1x16x128xf32>,
    %137 = vector.extract_strided_slice %118 {offsets = [36, 0], sizes = [16, 128], strides = [1, 1]} : vector<142x128xf32> to vector<16x128xf32>
    %c2_146 = arith.constant 2 : index
    %c0_147 = arith.constant 0 : index
    %c0_148 = arith.constant 0 : index
    %138 = vector.load %arg1[%c2_146, %c0_147, %c0_148] : memref<8x16x128xf32, #tpu.memory_space<vmem>>, vector<1x16x128xf32>
    %139 = vector.shape_cast %138 : vector<1x16x128xf32> to vector<16x128xf32>
    %140 = arith.addf %137, %139 : vector<16x128xf32>
    %cst_149 = arith.constant 0.000000e+00 : f32
    %141 = vector.broadcast %cst_149 : f32 to vector<16x128xf32>
    %142 = arith.maximumf %140, %141 : vector<16x128xf32>
    %c2_150 = arith.constant 2 : index
    %c0_151 = arith.constant 0 : index
    %c0_152 = arith.constant 0 : index
    %143 = vector.load %arg6[%c2_150, %c0_151, %c0_152] : memref<8x16x128xf32, #tpu.memory_space<vmem>>, vector<1x16x128xf32>
    %144 = vector.shape_cast %143 : vector<1x16x128xf32> to vector<16x128xf32>
    %145 = vector.shape_cast %142 : vector<16x128xf32> to vector<1x16x128xf32>
    tpu.vector_store %arg6[%c2_150, %c0_151, %c0_152], %145 {strides = array<i32>} : memref<8x16x128xf32, #tpu.memory_space<vmem>>, vector<1x16x128xf32>,
    %146 = vector.extract_strided_slice %118 {offsets = [54, 0], sizes = [16, 128], strides = [1, 1]} : vector<142x128xf32> to vector<16x128xf32>
    %c3_153 = arith.constant 3 : index
    %c0_154 = arith.constant 0 : index
    %c0_155 = arith.constant 0 : index
    %147 = vector.load %arg1[%c3_153, %c0_154, %c0_155] : memref<8x16x128xf32, #tpu.memory_space<vmem>>, vector<1x16x128xf32>
    %148 = vector.shape_cast %147 : vector<1x16x128xf32> to vector<16x128xf32>
    %149 = arith.addf %146, %148 : vector<16x128xf32>
    %cst_156 = arith.constant 0.000000e+00 : f32
    %150 = vector.broadcast %cst_156 : f32 to vector<16x128xf32>
    %151 = arith.maximumf %149, %150 : vector<16x128xf32>
    %c3_157 = arith.constant 3 : index
    %c0_158 = arith.constant 0 : index
    %c0_159 = arith.constant 0 : index
    %152 = vector.load %arg6[%c3_157, %c0_158, %c0_159] : memref<8x16x128xf32, #tpu.memory_space<vmem>>, vector<1x16x128xf32>
    %153 = vector.shape_cast %152 : vector<1x16x128xf32> to vector<16x128xf32>
    %154 = vector.shape_cast %151 : vector<16x128xf32> to vector<1x16x128xf32>
    tpu.vector_store %arg6[%c3_157, %c0_158, %c0_159], %154 {strides = array<i32>} : memref<8x16x128xf32, #tpu.memory_space<vmem>>, vector<1x16x128xf32>,
    %155 = vector.extract_strided_slice %118 {offsets = [72, 0], sizes = [16, 128], strides = [1, 1]} : vector<142x128xf32> to vector<16x128xf32>
    %c4_160 = arith.constant 4 : index
    %c0_161 = arith.constant 0 : index
    %c0_162 = arith.constant 0 : index
    %156 = vector.load %arg1[%c4_160, %c0_161, %c0_162] : memref<8x16x128xf32, #tpu.memory_space<vmem>>, vector<1x16x128xf32>
    %157 = vector.shape_cast %156 : vector<1x16x128xf32> to vector<16x128xf32>
    %158 = arith.addf %155, %157 : vector<16x128xf32>
    %cst_163 = arith.constant 0.000000e+00 : f32
    %159 = vector.broadcast %cst_163 : f32 to vector<16x128xf32>
    %160 = arith.maximumf %158, %159 : vector<16x128xf32>
    %c4_164 = arith.constant 4 : index
    %c0_165 = arith.constant 0 : index
    %c0_166 = arith.constant 0 : index
    %161 = vector.load %arg6[%c4_164, %c0_165, %c0_166] : memref<8x16x128xf32, #tpu.memory_space<vmem>>, vector<1x16x128xf32>
    %162 = vector.shape_cast %161 : vector<1x16x128xf32> to vector<16x128xf32>
    %163 = vector.shape_cast %160 : vector<16x128xf32> to vector<1x16x128xf32>
    tpu.vector_store %arg6[%c4_164, %c0_165, %c0_166], %163 {strides = array<i32>} : memref<8x16x128xf32, #tpu.memory_space<vmem>>, vector<1x16x128xf32>,
    %164 = vector.extract_strided_slice %118 {offsets = [90, 0], sizes = [16, 128], strides = [1, 1]} : vector<142x128xf32> to vector<16x128xf32>
    %c5_167 = arith.constant 5 : index
    %c0_168 = arith.constant 0 : index
    %c0_169 = arith.constant 0 : index
    %165 = vector.load %arg1[%c5_167, %c0_168, %c0_169] : memref<8x16x128xf32, #tpu.memory_space<vmem>>, vector<1x16x128xf32>
    %166 = vector.shape_cast %165 : vector<1x16x128xf32> to vector<16x128xf32>
    %167 = arith.addf %164, %166 : vector<16x128xf32>
    %cst_170 = arith.constant 0.000000e+00 : f32
    %168 = vector.broadcast %cst_170 : f32 to vector<16x128xf32>
    %169 = arith.maximumf %167, %168 : vector<16x128xf32>
    %c5_171 = arith.constant 5 : index
    %c0_172 = arith.constant 0 : index
    %c0_173 = arith.constant 0 : index
    %170 = vector.load %arg6[%c5_171, %c0_172, %c0_173] : memref<8x16x128xf32, #tpu.memory_space<vmem>>, vector<1x16x128xf32>
    %171 = vector.shape_cast %170 : vector<1x16x128xf32> to vector<16x128xf32>
    %172 = vector.shape_cast %169 : vector<16x128xf32> to vector<1x16x128xf32>
    tpu.vector_store %arg6[%c5_171, %c0_172, %c0_173], %172 {strides = array<i32>} : memref<8x16x128xf32, #tpu.memory_space<vmem>>, vector<1x16x128xf32>,
    %173 = vector.extract_strided_slice %118 {offsets = [108, 0], sizes = [16, 128], strides = [1, 1]} : vector<142x128xf32> to vector<16x128xf32>
    %c6_174 = arith.constant 6 : index
    %c0_175 = arith.constant 0 : index
    %c0_176 = arith.constant 0 : index
    %174 = vector.load %arg1[%c6_174, %c0_175, %c0_176] : memref<8x16x128xf32, #tpu.memory_space<vmem>>, vector<1x16x128xf32>
    %175 = vector.shape_cast %174 : vector<1x16x128xf32> to vector<16x128xf32>
    %176 = arith.addf %173, %175 : vector<16x128xf32>
    %cst_177 = arith.constant 0.000000e+00 : f32
    %177 = vector.broadcast %cst_177 : f32 to vector<16x128xf32>
    %178 = arith.maximumf %176, %177 : vector<16x128xf32>
    %c6_178 = arith.constant 6 : index
    %c0_179 = arith.constant 0 : index
    %c0_180 = arith.constant 0 : index
    %179 = vector.load %arg6[%c6_178, %c0_179, %c0_180] : memref<8x16x128xf32, #tpu.memory_space<vmem>>, vector<1x16x128xf32>
    %180 = vector.shape_cast %179 : vector<1x16x128xf32> to vector<16x128xf32>
    %181 = vector.shape_cast %178 : vector<16x128xf32> to vector<1x16x128xf32>
    tpu.vector_store %arg6[%c6_178, %c0_179, %c0_180], %181 {strides = array<i32>} : memref<8x16x128xf32, #tpu.memory_space<vmem>>, vector<1x16x128xf32>,
    %182 = vector.extract_strided_slice %118 {offsets = [126, 0], sizes = [16, 128], strides = [1, 1]} : vector<142x128xf32> to vector<16x128xf32>
    %c7_181 = arith.constant 7 : index
    %c0_182 = arith.constant 0 : index
    %c0_183 = arith.constant 0 : index
    %183 = vector.load %arg1[%c7_181, %c0_182, %c0_183] : memref<8x16x128xf32, #tpu.memory_space<vmem>>, vector<1x16x128xf32>
    %184 = vector.shape_cast %183 : vector<1x16x128xf32> to vector<16x128xf32>
    %185 = arith.addf %182, %184 : vector<16x128xf32>
    %cst_184 = arith.constant 0.000000e+00 : f32
    %186 = vector.broadcast %cst_184 : f32 to vector<16x128xf32>
    %187 = arith.maximumf %185, %186 : vector<16x128xf32>
    %c7_185 = arith.constant 7 : index
    %c0_186 = arith.constant 0 : index
    %c0_187 = arith.constant 0 : index
    %188 = vector.load %arg6[%c7_185, %c0_186, %c0_187] : memref<8x16x128xf32, #tpu.memory_space<vmem>>, vector<1x16x128xf32>
    %189 = vector.shape_cast %188 : vector<1x16x128xf32> to vector<16x128xf32>
    %190 = vector.shape_cast %187 : vector<16x128xf32> to vector<1x16x128xf32>
    tpu.vector_store %arg6[%c7_185, %c0_186, %c0_187], %190 {strides = array<i32>} : memref<8x16x128xf32, #tpu.memory_space<vmem>>, vector<1x16x128xf32>,
    return
  }
  func.func @transform_0(%arg0: i32) -> (i32, i32, i32) {
    %c0_i32 = arith.constant 0 : i32
    %c0_i32_0 = arith.constant 0 : i32
    %c0_i32_1 = arith.constant 0 : i32
    return %arg0, %c0_i32, %c0_i32_0 : i32, i32, i32
  }
  func.func @transform_1(%arg0: i32) -> (i32, i32, i32) {
    %c0_i32 = arith.constant 0 : i32
    %c0_i32_0 = arith.constant 0 : i32
    %c0_i32_1 = arith.constant 0 : i32
    %c0_i32_2 = arith.constant 0 : i32
    return %c0_i32, %c0_i32_0, %c0_i32_1 : i32, i32, i32
  }
  func.func @transform_2(%arg0: i32) -> (i32, i32) {
    %c0_i32 = arith.constant 0 : i32
    %c0_i32_0 = arith.constant 0 : i32
    %c0_i32_1 = arith.constant 0 : i32
    return %c0_i32, %c0_i32_0 : i32, i32
  }
  func.func @transform_3(%arg0: i32) -> (i32, i32, i32) {
    %c0_i32 = arith.constant 0 : i32
    %c0_i32_0 = arith.constant 0 : i32
    %c0_i32_1 = arith.constant 0 : i32
    %c0_i32_2 = arith.constant 0 : i32
    return %c0_i32, %c0_i32_0, %c0_i32_1 : i32, i32, i32
  }
  func.func @transform_4(%arg0: i32) -> (i32, i32) {
    %c0_i32 = arith.constant 0 : i32
    %c0_i32_0 = arith.constant 0 : i32
    %c0_i32_1 = arith.constant 0 : i32
    return %c0_i32, %c0_i32_0 : i32, i32
  }
  func.func @transform_5(%arg0: i32) -> (i32, i32, i32) {
    %c0_i32 = arith.constant 0 : i32
    %c0_i32_0 = arith.constant 0 : i32
    %c0_i32_1 = arith.constant 0 : i32
    return %arg0, %c0_i32, %c0_i32_0 : i32, i32, i32
  }
}

</mosaic_0001>

<llo_original>
// kernel: tpu_custom_call.1
$region0: #{tpu_custom_call.1}
  #allocation0 [shape = 'u32[]', space=smem, size = 0x4, offset = 0x4, fixed_abs, tag = 'smem constant byte address 0x4 - core index']
  #allocation1 [shape = 'u32[72,128]{1,0:T(1,128)}', space=vmem, size = 0x9000, scoped, tag = 'internal scratch']
  #allocation2 [shape = 'bf16[144,128]{1,0:T(8,128)(2,1)}', space=vmem, size = 0x9000, scoped, tag = 'scratch operand']
  #allocation3 [shape = 'bf16[144,128]{1,0:T(8,128)(2,1)}', space=vmem, size = 0x9000, scoped, tag = 'scratch operand']
  %s0 = inlined_call_operand.hbm [shape: f32[64,16,128], index: 0, kind: input, shape index: {}]
  %s1 = inlined_call_operand.hbm [shape: bf16[3,128,128], index: 1, kind: input, shape index: {}]
  %s2 = inlined_call_operand.vmem [shape: f32[1,128], index: 2, kind: input, shape index: {}]
  %s3 = inlined_call_operand.hbm [shape: bf16[3,128,128], index: 3, kind: input, shape index: {}]
  %s4 = inlined_call_operand.vmem [shape: f32[1,128], index: 4, kind: input, shape index: {}]
  %s5 = inlined_call_operand.hbm [shape: f32[64,16,128], index: 5, kind: output, shape index: {}]
  %s6 = sld [smem:[#allocation0]]
  $region65: #{tpu_custom_call.1} parent=0
    _
  %s8 = ssub.s32 1, %s6
  %s9 = scalar_select 0, %s8, %s6
  $region1: #{tpu_custom_call.1} parent=0
    #allocation4 [shape = 'u8[131072]{0}', space=vmem, size = 0x20000, scoped, tag = 'input window, operand 0']
    #allocation5 [shape = 's32[2]{0}', space=sflag, size = 0x8, scoped, tag = 'scoped memory for tpu_custom_call.1']
    #allocation6 [shape = 's32[2]{0}', space=sflag, size = 0x8, scoped, tag = 'scoped memory for tpu_custom_call.1']
    #allocation7 [shape = 'u8[98304]{0}', space=vmem, size = 0x18000, scoped, tag = 'input window, operand 1, single buffered']
    #allocation8 [shape = 's32[1]{0}', space=sflag, size = 0x4, scoped, tag = 'scoped memory for tpu_custom_call.1']
    #allocation9 [shape = 'u8[98304]{0}', space=vmem, size = 0x18000, scoped, tag = 'input window, operand 3, single buffered']
    #allocation10 [shape = 'u8[131072]{0}', space=vmem, size = 0x20000, scoped, tag = 'output window, operand 0']
    %10 = vsyncpa [#allocation5], 0
    %s11 = scalar_lea.sflag [#allocation5], 1
    %12 = vsyncpa %s11, 0
    %13 = vsyncpa [#allocation8], 0
    %14 = vsyncpa [#allocation6], 0
    %s15 = scalar_lea.sflag [#allocation6], 1
    %16 = vsyncpa %s15, 0
    loop: start=0, step=1, limit=10
    $region2: #{tpu_custom_call.1} parent=1 // loop_pre_header
      _
    $region3: #{tpu_custom_call.1} parent=1 // loop_header
      %s18 = sphi 0, %s22
      %p19 = scmp.ge.s32.totalorder %s18, 10
      %s28 = sphi 0, %s30
      %s31 = sphi 0, %s28
      %s32 = sphi 0, %s31
      %s48 = sphi 0, %s32
      %s52 = sphi 0, %s52
      %s54 = sphi 0, %s52
      %s55 = sphi 0, %s54
      %s69 = sphi 0, %s55
      %s73 = sphi 0, %s73
      %s75 = sphi 0, %s73
      %s76 = sphi 0, %s75
      %s90 = sphi 0, %s76
      %s94 = sphi 0, %s94
      %s96 = sphi 0, %s94
      %s97 = sphi 0, %s96
      %s111 = sphi 0, %s97
      %s115 = sphi 0, %s115
      %s117 = sphi 0, %s115
      %s118 = sphi 0, %s117
      %s132 = sphi 0, %s118
      %s138 = sphi 0, %s140
      %s141 = sphi 0, %s138
      %s142 = sphi 0, %s141
      %s158 = sphi 0, %s142
    $region4: #{tpu_custom_call.1} parent=1 // loop_header_branch
      %21 = sbr.rel (%p19) target = $region8
    $region5: #{tpu_custom_call.1} parent=1 // loop_body
      %s23 = ssub.s32 %s18, 1
      %s24 = ssub.s32 %s18, 2
      %s25 = sadd.s32 %s18, 1
      %s26 = ssub.s32 %s18, %s25
      %p27 = scmp.eq.s32.totalorder %s26, 0
      %s29 = sadd.s32 %s28, 1
      %s30 = scalar_select %p27, %s28, %s29
      %p33 = pneg %p27
      %p34 = scmp.eq.s32.totalorder %s18, 7
      %p35 = por %p33, %p34
      %p36 = scmp.ne.s32.totalorder %s28, %s31
      %p37 = scmp.eq.s32.totalorder %s18, 0
      %p38 = por %p36, %p37
      %p39 = scmp.ne.s32.totalorder %s28, %s31
      %p40 = scmp.eq.s32.totalorder %s23, 7
      %p41 = por %p39, %p40
      %p42 = scmp.ne.s32.totalorder %s31, %s32
      %p43 = scmp.eq.s32.totalorder %s23, 0
      %p44 = por %p42, %p43
      %p45 = scmp.ne.s32.totalorder %s31, %s32
      %p46 = scmp.eq.s32.totalorder %s24, 7
      %p47 = por %p45, %p46
      %p49 = scmp.ne.s32.totalorder %s32, %s48
      %p50 = scmp.eq.s32.totalorder %s24, 0
      %p51 = por %p49, %p50
      %s53 = sadd.s32 %s52, 1
      %p56 = scmp.eq.s32.totalorder %s18, 7
      %p57 = scmp.ne.s32.totalorder %s52, %s54
      %p58 = scmp.eq.s32.totalorder %s18, 0
      %p59 = por %p57, %p58
      %p60 = scmp.ne.s32.totalorder %s52, %s54
      %p61 = scmp.eq.s32.totalorder %s23, 7
      %p62 = por %p60, %p61
      %p63 = scmp.ne.s32.totalorder %s54, %s55
      %p64 = scmp.eq.s32.totalorder %s23, 0
      %p65 = por %p63, %p64
      %p66 = scmp.ne.s32.totalorder %s54, %s55
      %p67 = scmp.eq.s32.totalorder %s24, 7
      %p68 = por %p66, %p67
      %p70 = scmp.ne.s32.totalorder %s55, %s69
      %p71 = scmp.eq.s32.totalorder %s24, 0
      %p72 = por %p70, %p71
      %s74 = sadd.s32 %s73, 1
      %p77 = scmp.eq.s32.totalorder %s18, 7
      %p78 = scmp.ne.s32.totalorder %s73, %s75
      %p79 = scmp.eq.s32.totalorder %s18, 0
      %p80 = por %p78, %p79
      %p81 = scmp.ne.s32.totalorder %s73, %s75
      %p82 = scmp.eq.s32.totalorder %s23, 7
      %p83 = por %p81, %p82
      %p84 = scmp.ne.s32.totalorder %s75, %s76
      %p85 = scmp.eq.s32.totalorder %s23, 0
      %p86 = por %p84, %p85
      %p87 = scmp.ne.s32.totalorder %s75, %s76
      %p88 = scmp.eq.s32.totalorder %s24, 7
      %p89 = por %p87, %p88
      %p91 = scmp.ne.s32.totalorder %s76, %s90
      %p92 = scmp.eq.s32.totalorder %s24, 0
      %p93 = por %p91, %p92
      %s95 = sadd.s32 %s94, 1
      %p98 = scmp.eq.s32.totalorder %s18, 7
      %p99 = scmp.ne.s32.totalorder %s94, %s96
      %p100 = scmp.eq.s32.totalorder %s18, 0
      %p101 = por %p99, %p100
      %p102 = scmp.ne.s32.totalorder %s94, %s96
      %p103 = scmp.eq.s32.totalorder %s23, 7
      %p104 = por %p102, %p103
      %p105 = scmp.ne.s32.totalorder %s96, %s97
      %p106 = scmp.eq.s32.totalorder %s23, 0
      %p107 = por %p105, %p106
      %p108 = scmp.ne.s32.totalorder %s96, %s97
      %p109 = scmp.eq.s32.totalorder %s24, 7
      %p110 = por %p108, %p109
      %p112 = scmp.ne.s32.totalorder %s97, %s111
      %p113 = scmp.eq.s32.totalorder %s24, 0
      %p114 = por %p112, %p113
      %s116 = sadd.s32 %s115, 1
      %p119 = scmp.eq.s32.totalorder %s18, 7
      %p120 = scmp.ne.s32.totalorder %s115, %s117
      %p121 = scmp.eq.s32.totalorder %s18, 0
      %p122 = por %p120, %p121
      %p123 = scmp.ne.s32.totalorder %s115, %s117
      %p124 = scmp.eq.s32.totalorder %s23, 7
      %p125 = por %p123, %p124
      %p126 = scmp.ne.s32.totalorder %s117, %s118
      %p127 = scmp.eq.s32.totalorder %s23, 0
      %p128 = por %p126, %p127
      %p129 = scmp.ne.s32.totalorder %s117, %s118
      %p130 = scmp.eq.s32.totalorder %s24, 7
      %p131 = por %p129, %p130
      %p133 = scmp.ne.s32.totalorder %s118, %s132
      %p134 = scmp.eq.s32.totalorder %s24, 0
      %p135 = por %p133, %p134
      %s136 = ssub.s32 %s18, %s25
      %p137 = scmp.eq.s32.totalorder %s136, 0
      %s139 = sadd.s32 %s138, 1
      %s140 = scalar_select %p137, %s138, %s139
      %p143 = pneg %p137
      %p144 = scmp.eq.s32.totalorder %s18, 7
      %p145 = por %p143, %p144
      %p146 = scmp.ne.s32.totalorder %s138, %s141
      %p147 = scmp.eq.s32.totalorder %s18, 0
      %p148 = por %p146, %p147
      %p149 = scmp.ne.s32.totalorder %s138, %s141
      %p150 = scmp.eq.s32.totalorder %s23, 7
      %p151 = por %p149, %p150
      %p152 = scmp.ne.s32.totalorder %s141, %s142
      %p153 = scmp.eq.s32.totalorder %s23, 0
      %p154 = por %p152, %p153
      %p155 = scmp.ne.s32.totalorder %s141, %s142
      %p156 = scmp.eq.s32.totalorder %s24, 7
      %p157 = por %p155, %p156
      %p159 = scmp.ne.s32.totalorder %s142, %s158
      %p160 = scmp.eq.s32.totalorder %s24, 0
      %p161 = por %p159, %p160
      %p162 = scmp.le.s32.totalorder 1, %s18
      %p163 = scmp.lt.s32.totalorder %s18, 9
      %p164 = pnand %p162, %p163
      %p165 = pneg %p164
      // Predicated region
      $region9: #{tpu_custom_call.1} parent=5 // pred_check
        _
      $region10: #{tpu_custom_call.1} parent=5 // pred_check_branch
        %167 = sbr.rel (%p164) target = $region12
      $region11: #{tpu_custom_call.1} parent=5 // pred_region
        %s168 = ssub.s32 %s18, 1
        // Predicated region
        $region13: #{tpu_custom_call.1} parent=11 // pred_check
          %p169 = pneg %p65
        $region14: #{tpu_custom_call.1} parent=11 // pred_check_branch
          %171 = sbr.rel (%p169) target = $region16
        $region15: #{tpu_custom_call.1} parent=11 // pred_region
          %173 = vsyncadd [#allocation8], 0
          %s174 = sshll.u32 %s1, 4
          %s175 = int_to_ptr.hbm [resolvable:$true] %s174
          %s176 = sshll.u32 [#allocation7], 4
          %s177 = int_to_ptr.vmem [resolvable:$true] %s176
          %182 = dma.hbm_to_vmem [thread:$0]  %s175, 3072, %s177, [#allocation8], 64, 64, 4
        $region16: #{tpu_custom_call.1} parent=11 // pred_fallthru
          _
        // Predicated region
        $region17: #{tpu_custom_call.1} parent=11 // pred_check
          %p183 = pneg %p86
        $region18: #{tpu_custom_call.1} parent=11 // pred_check_branch
          %185 = sbr.rel (%p183) target = $region20
        $region19: #{tpu_custom_call.1} parent=11 // pred_region
          _
        $region20: #{tpu_custom_call.1} parent=11 // pred_fallthru
          _
        // Predicated region
        $region21: #{tpu_custom_call.1} parent=11 // pred_check
          %p186 = pneg %p107
        $region22: #{tpu_custom_call.1} parent=11 // pred_check_branch
          %188 = sbr.rel (%p186) target = $region24
        $region23: #{tpu_custom_call.1} parent=11 // pred_region
          %190 = vsyncadd [#allocation8], 0
          %s191 = sshll.u32 %s3, 4
          %s192 = int_to_ptr.hbm [resolvable:$true] %s191
          %s193 = sshll.u32 [#allocation9], 4
          %s194 = int_to_ptr.vmem [resolvable:$true] %s193
          %199 = dma.hbm_to_vmem [thread:$0]  %s192, 3072, %s194, [#allocation8], 64, 64, 4
        $region24: #{tpu_custom_call.1} parent=11 // pred_fallthru
          _
        // Predicated region
        $region25: #{tpu_custom_call.1} parent=11 // pred_check
          %p200 = pneg %p128
        $region26: #{tpu_custom_call.1} parent=11 // pred_check_branch
          %202 = sbr.rel (%p200) target = $region28
        $region27: #{tpu_custom_call.1} parent=11 // pred_region
          _
        $region28: #{tpu_custom_call.1} parent=11 // pred_fallthru
          _
      $region12: #{tpu_custom_call.1} parent=5 // pred_fallthru
        _
      %p203 = scmp.lt.s32.totalorder %s18, 8
      // Predicated region
      $region29: #{tpu_custom_call.1} parent=5 // pred_check
        %p204 = pneg %p203
      $region30: #{tpu_custom_call.1} parent=5 // pred_check_branch
        %206 = sbr.rel (%p204) target = $region32
      $region31: #{tpu_custom_call.1} parent=5 // pred_region
        // Predicated region
        $region33: #{tpu_custom_call.1} parent=31 // pred_check
          %p207 = pneg %p38
        $region34: #{tpu_custom_call.1} parent=31 // pred_check_branch
          %209 = sbr.rel (%p207) target = $region36
        $region35: #{tpu_custom_call.1} parent=31 // pred_region
          %s210 = sand.u32 %s28, 1
          %s211 = scalar_lea.sflag [#allocation5], %s210
          %s212 = sand.u32 %s28, 1
          %s213 = smul.addr %s212, 128
          %s214 = scalar_lea.vmem [#allocation4], %s213
          %s215 = smul.u32 8, %s18
          %217 = vsyncadd %s211, 0
          %s218 = smul.addr %s215, 2
          %s219 = smul.addr %s218, 8
          %s220 = scalar_lea.hbm %s0, %s219
          %s221 = sshll.u32 %s220, 4
          %s222 = int_to_ptr.hbm [resolvable:$true] %s221
          %s223 = sshll.u32 %s214, 4
          %s224 = int_to_ptr.vmem [resolvable:$true] %s223
          %229 = dma.hbm_to_vmem [thread:$0]  %s222, 2048, %s224, %s211, 128, 128, 8
        $region36: #{tpu_custom_call.1} parent=31 // pred_fallthru
          _
      $region32: #{tpu_custom_call.1} parent=5 // pred_fallthru
        _
      %p230 = scmp.le.s32.totalorder 1, %s18
      %p231 = scmp.lt.s32.totalorder %s18, 9
      %p232 = pnand %p230, %p231
      %p233 = pneg %p232
      // Predicated region
      $region37: #{tpu_custom_call.1} parent=5 // pred_check
        _
      $region38: #{tpu_custom_call.1} parent=5 // pred_check_branch
        %235 = sbr.rel (%p232) target = $region40
      $region39: #{tpu_custom_call.1} parent=5 // pred_region
        %s236 = ssub.s32 %s18, 1
        %s237 = sand.u32 %s31, 1
        %s238 = scalar_lea.sflag [#allocation5], %s237
        %s239 = sand.u32 %s31, 1
        %s240 = smul.addr %s239, 128
        %s241 = scalar_lea.vmem [#allocation4], %s240
        // Predicated region
        $region41: #{tpu_custom_call.1} parent=39 // pred_check
          %p242 = pneg %p44
        $region42: #{tpu_custom_call.1} parent=39 // pred_check_branch
          %244 = sbr.rel (%p242) target = $region44
        $region43: #{tpu_custom_call.1} parent=39 // pred_region
          %246 = dma.done %s238, 2048
        $region44: #{tpu_custom_call.1} parent=39 // pred_fallthru
          _
        // Predicated region
        $region45: #{tpu_custom_call.1} parent=39 // pred_check
          %p247 = pneg %p65
        $region46: #{tpu_custom_call.1} parent=39 // pred_check_branch
          %249 = sbr.rel (%p247) target = $region48
        $region47: #{tpu_custom_call.1} parent=39 // pred_region
          %251 = dma.done [#allocation8], 3072
        $region48: #{tpu_custom_call.1} parent=39 // pred_fallthru
          _
        // Predicated region
        $region49: #{tpu_custom_call.1} parent=39 // pred_check
          %p252 = pneg %p107
        $region50: #{tpu_custom_call.1} parent=39 // pred_check_branch
          %254 = sbr.rel (%p252) target = $region52
        $region51: #{tpu_custom_call.1} parent=39 // pred_region
          %256 = dma.done [#allocation8], 3072
        $region52: #{tpu_custom_call.1} parent=39 // pred_fallthru
          _
        %s257 = sand.u32 %s31, 1
        %s258 = scalar_lea.sflag [#allocation5], %s257
        %s259 = sand.u32 %s31, 1
        %s260 = smul.addr %s259, 128
        %s261 = scalar_lea.vmem [#allocation4], %s260
        %p262 = pneg %p44
        %p263 = pneg %p41
        %p264 = pneg %p65
        %p265 = pneg %p62
        %p266 = pneg %p86
        %p267 = pneg %p83
        %p268 = pneg %p107
        %p269 = pneg %p104
        %p270 = pneg %p128
        %p271 = pneg %p125
        %p272 = pneg %p154
        %p273 = pneg %p151
        %s274 = sand.u32 %s141, 1
        %s275 = scalar_lea.sflag [#allocation6], %s274
        %s276 = sand.u32 %s141, 1
        %s277 = smul.addr %s276, 128
        %s278 = scalar_lea.vmem [#allocation10], %s277
        %s279 = smul.u32 8, %s23
        %s280 = smul.u32 8, %s23
        %vm282 = vcmask 1040384
        %vm283 = vsmask.f32 256
        %vm284 = vmand %vm282, %vm283
        %v285 = vld [vmem:[#allocation2] sm:$0x1]
        %v286 = vsel %vm284, 0, %v285
        %287 = vst [vmem:[#allocation2] sm:$0x1] %v286
        %vm288 = vsmask.f32 7938
        %vm289 = vmand %vm282, %vm288
        %v290 = vld [vmem:[#allocation2 + $0x8] sm:$0x1]
        %v291 = vsel %vm289, 0, %v290
        %292 = vst [vmem:[#allocation2 + $0x8] sm:$0x1] %v291
        %v293 = vld [vmem:[#allocation3] sm:$0x1]
        %v294 = vsel %vm284, 0, %v293
        %295 = vst [vmem:[#allocation3] sm:$0x1] %v294
        %v296 = vld [vmem:[#allocation3 + $0x8] sm:$0x1]
        %v297 = vsel %vm289, 0, %v296
        %298 = vst [vmem:[#allocation3 + $0x8] sm:$0x1] %v297
        %v299 = vld [vmem:[%s241] sm:$0xff]
        %v300 = vld [vmem:[%s241 + $0x8] sm:$0xff]
        %v301 = vpack.c.bf16 %v299, %v299
        %v302 = vpack.c.bf16 %v300, %v300
        %vm303 = vsmask.f32 4368
        %vm304 = vmor %vm283, %vm303
        %v306 = vshrl.u32 %v301, 16
        %v308 = vrot.slane %v306, 7
        %v309 = vshll.u32 %v301, 16
        %v311 = vor.u32 %v308, %v309
        %v312 = vrot.slane %v308, 4
        %v314 = vshrl.u32 %v302, 16
        %v316 = vrot.slane %v314, 7
        %v317 = vshll.u32 %v302, 16
        %v319 = vor.u32 %v316, %v317
        %v320 = vsel %vm304, %v312, %v319
        %v321 = vrot.slane %v316, 4
        %vm325 = vcmask 1043456
        %vm326 = vmand %vm325, %vm288
        %v327 = vld [vmem:[#allocation2] sm:$0xf]
        %v328 = vsel %vm326, %v311, %v327
        %329 = vst [vmem:[#allocation2] sm:$0xf] %v328
        %330 = vst [vmem:[#allocation2 + $0x4] sm:$0xf] %v320
        %v331 = vld [vmem:[#allocation2 + $0x8] sm:$0x1]
        %v332 = vsel %vm284, %v321, %v331
        %333 = vst [vmem:[#allocation2 + $0x8] sm:$0x1] %v332
        %vm334 = vcmask 1041409
        %vm335 = vsmask.f32 1280
        %vm336 = vmand %vm334, %vm335
        %v337 = vld [vmem:[#allocation2 + $0x8] sm:$0x2]
        %v338 = vsel %vm336, 0, %v337
        %339 = vst [vmem:[#allocation2 + $0x8] sm:$0x2] %v338
        %vm340 = vsmask.f32 7942
        %vm341 = vmand %vm334, %vm340
        %v342 = vld [vmem:[#allocation2 + $0x10] sm:$0x2]
        %v343 = vsel %vm341, 0, %v342
        %344 = vst [vmem:[#allocation2 + $0x10] sm:$0x2] %v343
        %v345 = vld [vmem:[#allocation3 + $0x8] sm:$0x2]
        %v346 = vsel %vm336, 0, %v345
        %347 = vst [vmem:[#allocation3 + $0x8] sm:$0x2] %v346
        %v348 = vld [vmem:[#allocation3 + $0x10] sm:$0x2]
        %v349 = vsel %vm341, 0, %v348
        %350 = vst [vmem:[#allocation3 + $0x10] sm:$0x2] %v349
        %s351 = scalar_lea.vmem %s241, 16 [#allocation4]
        %v352 = vld [vmem:[%s351] sm:$0xff]
        %v353 = vld [vmem:[%s351 + $0x8] sm:$0xff]
        %v354 = vpack.c.bf16 %v352, %v352
        %v355 = vpack.c.bf16 %v353, %v353
        %vm356 = vsmask.f32 5392
        %vm357 = vmor %vm335, %vm356
        %v359 = vshrl.u32 %v354, 16
        %v361 = vrot.slane %v359, 6
        %v362 = vshll.u32 %v354, 16
        %v364 = vrot.slane %v362, 7
        %v365 = vor.u32 %v361, %v364
        %v366 = vrot.slane %v365, 4
        %v368 = vshrl.u32 %v355, 16
        %v370 = vrot.slane %v368, 6
        %v371 = vshll.u32 %v355, 16
        %v373 = vrot.slane %v371, 7
        %v374 = vor.u32 %v370, %v373
        %v375 = vsel %vm357, %v366, %v374
        %v376 = vrot.slane %v374, 4
        %vm380 = vcmask 1043457
        %vm381 = vmand %vm380, %vm340
        %v382 = vld [vmem:[#allocation2 + $0x8] sm:$0xe]
        %v383 = vsel %vm381, %v365, %v382
        %384 = vst [vmem:[#allocation2 + $0x8] sm:$0xe] %v383
        %385 = vst [vmem:[#allocation2 + $0xc] sm:$0xf] %v375
        %vm386 = vcmask 1041408
        %vm387 = vmand %vm386, %vm335
        %v388 = vld [vmem:[#allocation2 + $0x10] sm:$0x3]
        %v389 = vsel %vm387, %v376, %v388
        %390 = vst [vmem:[#allocation2 + $0x10] sm:$0x3] %v389
        %vm391 = vcmask 1042434
        %vm392 = vsmask.f32 2304
        %vm393 = vmand %vm391, %vm392
        %v394 = vld [vmem:[#allocation2 + $0x10] sm:$0x4]
        %v395 = vsel %vm393, 0, %v394
        %396 = vst [vmem:[#allocation2 + $0x10] sm:$0x4] %v395
        %vm397 = vsmask.f32 7946
        %vm398 = vmand %vm391, %vm397
        %v399 = vld [vmem:[#allocation2 + $0x18] sm:$0x4]
        %v400 = vsel %vm398, 0, %v399
        %401 = vst [vmem:[#allocation2 + $0x18] sm:$0x4] %v400
        %v402 = vld [vmem:[#allocation3 + $0x10] sm:$0x4]
        %v403 = vsel %vm393, 0, %v402
        %404 = vst [vmem:[#allocation3 + $0x10] sm:$0x4] %v403
        %v405 = vld [vmem:[#allocation3 + $0x18] sm:$0x4]
        %v406 = vsel %vm398, 0, %v405
        %407 = vst [vmem:[#allocation3 + $0x18] sm:$0x4] %v406
        %s408 = scalar_lea.vmem %s241, 32 [#allocation4]
        %v409 = vld [vmem:[%s408] sm:$0xff]
        %v410 = vld [vmem:[%s408 + $0x8] sm:$0xff]
        %v411 = vpack.c.bf16 %v409, %v409
        %v412 = vpack.c.bf16 %v410, %v410
        %vm413 = vsmask.f32 6416
        %vm414 = vmor %vm392, %vm413
        %v416 = vshrl.u32 %v411, 16
        %v418 = vrot.slane %v416, 5
        %v419 = vshll.u32 %v411, 16
        %v421 = vrot.slane %v419, 6
        %v422 = vor.u32 %v418, %v421
        %v423 = vrot.slane %v422, 4
        %v425 = vshrl.u32 %v412, 16
        %v427 = vrot.slane %v425, 5
        %v428 = vshll.u32 %v412, 16
        %v430 = vrot.slane %v428, 6
        %v431 = vor.u32 %v427, %v430
        %v432 = vsel %vm414, %v423, %v431
        %v433 = vrot.slane %v431, 4
        %vm437 = vcmask 1043458
        %vm438 = vmand %vm437, %vm397
        %v439 = vld [vmem:[#allocation2 + $0x10] sm:$0xc]
        %v440 = vsel %vm438, %v422, %v439
        %441 = vst [vmem:[#allocation2 + $0x10] sm:$0xc] %v440
        %442 = vst [vmem:[#allocation2 + $0x14] sm:$0xf] %v432
        %vm443 = vcmask 1042432
        %vm444 = vmand %vm443, %vm392
        %v445 = vld [vmem:[#allocation2 + $0x18] sm:$0x7]
        %v446 = vsel %vm444, %v433, %v445
        %447 = vst [vmem:[#allocation2 + $0x18] sm:$0x7] %v446
        %vm448 = vcmask 1043459
        %vm449 = vsmask.f32 3328
        %vm450 = vmand %vm448, %vm449
        %v451 = vld [vmem:[#allocation2 + $0x18] sm:$0x8]
        %v452 = vsel %vm450, 0, %v451
        %453 = vst [vmem:[#allocation2 + $0x18] sm:$0x8] %v452
        %vm454 = vsmask.f32 7950
        %vm455 = vmand %vm448, %vm454
        %v456 = vld [vmem:[#allocation2 + $0x20] sm:$0x8]
        %v457 = vsel %vm455, 0, %v456
        %458 = vst [vmem:[#allocation2 + $0x20] sm:$0x8] %v457
        %v459 = vld [vmem:[#allocation3 + $0x18] sm:$0x8]
        %v460 = vsel %vm450, 0, %v459
        %461 = vst [vmem:[#allocation3 + $0x18] sm:$0x8] %v460
        %v462 = vld [vmem:[#allocation3 + $0x20] sm:$0x8]
        %v463 = vsel %vm455, 0, %v462
        %464 = vst [vmem:[#allocation3 + $0x20] sm:$0x8] %v463
        %s465 = scalar_lea.vmem %s241, 48 [#allocation4]
        %v466 = vld [vmem:[%s465] sm:$0xff]
        %v467 = vld [vmem:[%s465 + $0x8] sm:$0xff]
        %v468 = vpack.c.bf16 %v466, %v466
        %v469 = vpack.c.bf16 %v467, %v467
        %vm470 = vsmask.f32 7440
        %vm471 = vmor %vm449, %vm470
        %v473 = vshll.u32 %v468, 16
        %v475 = vrot.slane %v473, 5
        %v476 = vshrl.u32 %v468, 16
        %v478 = vrot.slane %v476, 4
        %v479 = vor.u32 %v478, %v475
        %v480 = vrot.slane %v479, 4
        %v482 = vshll.u32 %v469, 16
        %v484 = vrot.slane %v482, 5
        %v485 = vsel %vm471, %v480, %v484
        %v486 = vshrl.u32 %v469, 16
        %v488 = vrot.slane %v486, 4
        %v489 = vor.u32 %v488, %v484
        %v490 = vrot.slane %v489, 4
        %v494 = vld [vmem:[#allocation2 + $0x18] sm:$0x8]
        %v495 = vsel %vm455, %v475, %v494
        %496 = vst [vmem:[#allocation2 + $0x18] sm:$0x8] %v495
        %497 = vst [vmem:[#allocation2 + $0x1c] sm:$0xf] %v485
        %vm498 = vmand %vm325, %vm449
        %v499 = vld [vmem:[#allocation2 + $0x20] sm:$0xf]
        %v500 = vsel %vm498, %v490, %v499
        %501 = vst [vmem:[#allocation2 + $0x20] sm:$0xf] %v500
        %v502 = vld [vmem:[#allocation2 + $0x24] sm:$0x1]
        %v503 = vsel %vm284, 0, %v502
        %504 = vst [vmem:[#allocation2 + $0x24] sm:$0x1] %v503
        %v505 = vld [vmem:[#allocation2 + $0x2c] sm:$0x1]
        %v506 = vsel %vm289, 0, %v505
        %507 = vst [vmem:[#allocation2 + $0x2c] sm:$0x1] %v506
        %v508 = vld [vmem:[#allocation3 + $0x24] sm:$0x1]
        %v509 = vsel %vm284, 0, %v508
        %510 = vst [vmem:[#allocation3 + $0x24] sm:$0x1] %v509
        %v511 = vld [vmem:[#allocation3 + $0x2c] sm:$0x1]
        %v512 = vsel %vm289, 0, %v511
        %513 = vst [vmem:[#allocation3 + $0x2c] sm:$0x1] %v512
        %s514 = scalar_lea.vmem %s241, 64 [#allocation4]
        %v515 = vld [vmem:[%s514] sm:$0xff]
        %v516 = vld [vmem:[%s514 + $0x8] sm:$0xff]
        %v517 = vpack.c.bf16 %v515, %v515
        %v518 = vpack.c.bf16 %v516, %v516
        %v520 = vshrl.u32 %v517, 16
        %v522 = vrot.slane %v520, 7
        %v523 = vshll.u32 %v517, 16
        %v525 = vor.u32 %v522, %v523
        %v526 = vrot.slane %v522, 4
        %v528 = vshrl.u32 %v518, 16
        %v530 = vrot.slane %v528, 7
        %v531 = vshll.u32 %v518, 16
        %v533 = vor.u32 %v530, %v531
        %v534 = vsel %vm304, %v526, %v533
        %v535 = vrot.slane %v530, 4
        %v539 = vld [vmem:[#allocation2 + $0x24] sm:$0xf]
        %v540 = vsel %vm326, %v525, %v539
        %541 = vst [vmem:[#allocation2 + $0x24] sm:$0xf] %v540
        %542 = vst [vmem:[#allocation2 + $0x28] sm:$0xf] %v534
        %v543 = vld [vmem:[#allocation2 + $0x2c] sm:$0x1]
        %v544 = vsel %vm284, %v535, %v543
        %545 = vst [vmem:[#allocation2 + $0x2c] sm:$0x1] %v544
        %v546 = vld [vmem:[#allocation2 + $0x2c] sm:$0x2]
        %v547 = vsel %vm336, 0, %v546
        %548 = vst [vmem:[#allocation2 + $0x2c] sm:$0x2] %v547
        %v549 = vld [vmem:[#allocation2 + $0x34] sm:$0x2]
        %v550 = vsel %vm341, 0, %v549
        %551 = vst [vmem:[#allocation2 + $0x34] sm:$0x2] %v550
        %v552 = vld [vmem:[#allocation3 + $0x2c] sm:$0x2]
        %v553 = vsel %vm336, 0, %v552
        %554 = vst [vmem:[#allocation3 + $0x2c] sm:$0x2] %v553
        %v555 = vld [vmem:[#allocation3 + $0x34] sm:$0x2]
        %v556 = vsel %vm341, 0, %v555
        %557 = vst [vmem:[#allocation3 + $0x34] sm:$0x2] %v556
        %s558 = scalar_lea.vmem %s241, 80 [#allocation4]
        %v559 = vld [vmem:[%s558] sm:$0xff]
        %v560 = vld [vmem:[%s558 + $0x8] sm:$0xff]
        %v561 = vpack.c.bf16 %v559, %v559
        %v562 = vpack.c.bf16 %v560, %v560
        %v564 = vshrl.u32 %v561, 16
        %v566 = vrot.slane %v564, 6
        %v567 = vshll.u32 %v561, 16
        %v569 = vrot.slane %v567, 7
        %v570 = vor.u32 %v566, %v569
        %v571 = vrot.slane %v570, 4
        %v573 = vshrl.u32 %v562, 16
        %v575 = vrot.slane %v573, 6
        %v576 = vshll.u32 %v562, 16
        %v578 = vrot.slane %v576, 7
        %v579 = vor.u32 %v575, %v578
        %v580 = vsel %vm357, %v571, %v579
        %v581 = vrot.slane %v579, 4
        %v585 = vld [vmem:[#allocation2 + $0x2c] sm:$0xe]
        %v586 = vsel %vm381, %v570, %v585
        %587 = vst [vmem:[#allocation2 + $0x2c] sm:$0xe] %v586
        %588 = vst [vmem:[#allocation2 + $0x30] sm:$0xf] %v580
        %v589 = vld [vmem:[#allocation2 + $0x34] sm:$0x3]
        %v590 = vsel %vm387, %v581, %v589
        %591 = vst [vmem:[#allocation2 + $0x34] sm:$0x3] %v590
        %v592 = vld [vmem:[#allocation2 + $0x34] sm:$0x4]
        %v593 = vsel %vm393, 0, %v592
        %594 = vst [vmem:[#allocation2 + $0x34] sm:$0x4] %v593
        %v595 = vld [vmem:[#allocation2 + $0x3c] sm:$0x4]
        %v596 = vsel %vm398, 0, %v595
        %597 = vst [vmem:[#allocation2 + $0x3c] sm:$0x4] %v596
        %v598 = vld [vmem:[#allocation3 + $0x34] sm:$0x4]
        %v599 = vsel %vm393, 0, %v598
        %600 = vst [vmem:[#allocation3 + $0x34] sm:$0x4] %v599
        %v601 = vld [vmem:[#allocation3 + $0x3c] sm:$0x4]
        %v602 = vsel %vm398, 0, %v601
        %603 = vst [vmem:[#allocation3 + $0x3c] sm:$0x4] %v602
        %s604 = scalar_lea.vmem %s241, 96 [#allocation4]
        %v605 = vld [vmem:[%s604] sm:$0xff]
        %v606 = vld [vmem:[%s604 + $0x8] sm:$0xff]
        %v607 = vpack.c.bf16 %v605, %v605
        %v608 = vpack.c.bf16 %v606, %v606
        %v610 = vshrl.u32 %v607, 16
        %v612 = vrot.slane %v610, 5
        %v613 = vshll.u32 %v607, 16
        %v615 = vrot.slane %v613, 6
        %v616 = vor.u32 %v612, %v615
        %v617 = vrot.slane %v616, 4
        %v619 = vshrl.u32 %v608, 16
        %v621 = vrot.slane %v619, 5
        %v622 = vshll.u32 %v608, 16
        %v624 = vrot.slane %v622, 6
        %v625 = vor.u32 %v621, %v624
        %v626 = vsel %vm414, %v617, %v625
        %v627 = vrot.slane %v625, 4
        %v631 = vld [vmem:[#allocation2 + $0x34] sm:$0xc]
        %v632 = vsel %vm438, %v616, %v631
        %633 = vst [vmem:[#allocation2 + $0x34] sm:$0xc] %v632
        %634 = vst [vmem:[#allocation2 + $0x38] sm:$0xf] %v626
        %v635 = vld [vmem:[#allocation2 + $0x3c] sm:$0x7]
        %v636 = vsel %vm444, %v627, %v635
        %637 = vst [vmem:[#allocation2 + $0x3c] sm:$0x7] %v636
        %v638 = vld [vmem:[#allocation2 + $0x3c] sm:$0x8]
        %v639 = vsel %vm450, 0, %v638
        %640 = vst [vmem:[#allocation2 + $0x3c] sm:$0x8] %v639
        %v641 = vld [vmem:[#allocation2 + $0x44] sm:$0x8]
        %v642 = vsel %vm455, 0, %v641
        %643 = vst [vmem:[#allocation2 + $0x44] sm:$0x8] %v642
        %v644 = vld [vmem:[#allocation3 + $0x3c] sm:$0x8]
        %v645 = vsel %vm450, 0, %v644
        %646 = vst [vmem:[#allocation3 + $0x3c] sm:$0x8] %v645
        %v647 = vld [vmem:[#allocation3 + $0x44] sm:$0x8]
        %v648 = vsel %vm455, 0, %v647
        %649 = vst [vmem:[#allocation3 + $0x44] sm:$0x8] %v648
        %s650 = scalar_lea.vmem %s241, 112 [#allocation4]
        %v651 = vld [vmem:[%s650] sm:$0xff]
        %v652 = vld [vmem:[%s650 + $0x8] sm:$0xff]
        %v653 = vpack.c.bf16 %v651, %v651
        %v654 = vpack.c.bf16 %v652, %v652
        %v656 = vshll.u32 %v653, 16
        %v658 = vrot.slane %v656, 5
        %v659 = vshrl.u32 %v653, 16
        %v661 = vrot.slane %v659, 4
        %v662 = vor.u32 %v661, %v658
        %v663 = vrot.slane %v662, 4
        %v665 = vshll.u32 %v654, 16
        %v667 = vrot.slane %v665, 5
        %v668 = vsel %vm471, %v663, %v667
        %v669 = vshrl.u32 %v654, 16
        %v671 = vrot.slane %v669, 4
        %v672 = vor.u32 %v671, %v667
        %v673 = vrot.slane %v672, 4
        %v677 = vld [vmem:[#allocation2 + $0x3c] sm:$0x8]
        %v678 = vsel %vm455, %v658, %v677
        %679 = vst [vmem:[#allocation2 + $0x3c] sm:$0x8] %v678
        %680 = vst [vmem:[#allocation2 + $0x40] sm:$0xf] %v668
        %v681 = vld [vmem:[#allocation2 + $0x44] sm:$0xf]
        %v682 = vsel %vm498, %v673, %v681
        %683 = vst [vmem:[#allocation2 + $0x44] sm:$0xf] %v682
        %v684 = vld [vmem:[%s2] sm:$0x1]
        %v685 = vld [vmem:[%s4] sm:$0x1]
        %v686 = vld [vmem:[#allocation2] sm:$0xf]
        %v687 = vld [vmem:[#allocation2 + $0x4] sm:$0xf]
        %v688 = vld [vmem:[#allocation2 + $0x8] sm:$0xf]
        %v689 = vld [vmem:[#allocation2 + $0xc] sm:$0xf]
        %v690 = vld [vmem:[#allocation2 + $0x10] sm:$0xf]
        %v691 = vld [vmem:[#allocation2 + $0x14] sm:$0xf]
        %v692 = vld [vmem:[#allocation2 + $0x18] sm:$0xf]
        %v693 = vld [vmem:[#allocation2 + $0x1c] sm:$0xf]
        %v694 = vld [vmem:[#allocation2 + $0x20] sm:$0xf]
        %v695 = vld [vmem:[#allocation2 + $0x24] sm:$0xf]
        %v696 = vld [vmem:[#allocation2 + $0x28] sm:$0xf]
        %v697 = vld [vmem:[#allocation2 + $0x2c] sm:$0xf]
        %v698 = vld [vmem:[#allocation2 + $0x30] sm:$0xf]
        %v699 = vld [vmem:[#allocation2 + $0x34] sm:$0xf]
        %v700 = vld [vmem:[#allocation2 + $0x38] sm:$0xf]
        %v701 = vld [vmem:[#allocation2 + $0x3c] sm:$0xf]
        %v702 = vld [vmem:[#allocation2 + $0x40] sm:$0xf]
        %v703 = vld [vmem:[#allocation2 + $0x44] sm:$0x7]
        %v704 = vld [vmem:[#allocation7] sm:$0xf]
        %v705 = vld [vmem:[#allocation7 + $0x4] sm:$0xf]
        %v706 = vld [vmem:[#allocation7 + $0x8] sm:$0xf]
        %v707 = vld [vmem:[#allocation7 + $0xc] sm:$0xf]
        %v708 = vld [vmem:[#allocation7 + $0x10] sm:$0xf]
        %v709 = vld [vmem:[#allocation7 + $0x14] sm:$0xf]
        %v710 = vld [vmem:[#allocation7 + $0x18] sm:$0xf]
        %v711 = vld [vmem:[#allocation7 + $0x1c] sm:$0xf]
        %v712 = vld [vmem:[#allocation7 + $0x20] sm:$0xf]
        %v713 = vld [vmem:[#allocation7 + $0x24] sm:$0xf]
        %v714 = vld [vmem:[#allocation7 + $0x28] sm:$0xf]
        %v715 = vld [vmem:[#allocation7 + $0x2c] sm:$0xf]
        %v716 = vld [vmem:[#allocation7 + $0x30] sm:$0xf]
        %v717 = vld [vmem:[#allocation7 + $0x34] sm:$0xf]
        %v718 = vld [vmem:[#allocation7 + $0x38] sm:$0xf]
        %v719 = vld [vmem:[#allocation7 + $0x3c] sm:$0xf]
        %v720 = vld [vmem:[#allocation2 + $0x44] sm:$0xf]
        %s721 = scalar_lea.vmem [#allocation7], 64
        %v722 = vld [vmem:[%s721] sm:$0xf]
        %v723 = vld [vmem:[%s721 + $0x4] sm:$0xf]
        %v724 = vld [vmem:[%s721 + $0x8] sm:$0xf]
        %v725 = vld [vmem:[%s721 + $0xc] sm:$0xf]
        %v726 = vld [vmem:[%s721 + $0x10] sm:$0xf]
        %v727 = vld [vmem:[%s721 + $0x14] sm:$0xf]
        %v728 = vld [vmem:[%s721 + $0x18] sm:$0xf]
        %v729 = vld [vmem:[%s721 + $0x1c] sm:$0xf]
        %v730 = vld [vmem:[%s721 + $0x20] sm:$0xf]
        %v731 = vld [vmem:[%s721 + $0x24] sm:$0xf]
        %v732 = vld [vmem:[%s721 + $0x28] sm:$0xf]
        %v733 = vld [vmem:[%s721 + $0x2c] sm:$0xf]
        %v734 = vld [vmem:[%s721 + $0x30] sm:$0xf]
        %v735 = vld [vmem:[%s721 + $0x34] sm:$0xf]
        %v736 = vld [vmem:[%s721 + $0x38] sm:$0xf]
        %v737 = vld [vmem:[%s721 + $0x3c] sm:$0xf]
        %v756 = vunpack.c.l.b16 %v686
        %v757 = vunpack.c.l.b16 %v687
        %v758 = vunpack.c.l.b16 %v688
        %v759 = vunpack.c.l.b16 %v689
        %v760 = vunpack.c.l.b16 %v690
        %v761 = vunpack.c.l.b16 %v691
        %v762 = vunpack.c.l.b16 %v692
        %v763 = vunpack.c.l.b16 %v693
        %v764 = vunpack.c.l.b16 %v694
        %v765 = vunpack.c.l.b16 %v695
        %v766 = vunpack.c.l.b16 %v696
        %v767 = vunpack.c.l.b16 %v697
        %v768 = vunpack.c.l.b16 %v698
        %v769 = vunpack.c.l.b16 %v699
        %v770 = vunpack.c.l.b16 %v700
        %v771 = vunpack.c.l.b16 %v701
        %v772 = vunpack.c.l.b16 %v702
        %v773 = vunpack.c.l.b16 %v720
        %v774 = vpack.c.b16 %v757, %v756
        %v775 = vpack.c.b16 %v759, %v758
        %v776 = vpack.c.b16 %v761, %v760
        %v777 = vpack.c.b16 %v763, %v762
        %v778 = vpack.c.b16 %v765, %v764
        %v779 = vpack.c.b16 %v767, %v766
        %v780 = vpack.c.b16 %v769, %v768
        %v781 = vpack.c.b16 %v771, %v770
        %v782 = vpack.c.b16 %v773, %v772
        %vm783 = vsmask.f32 7424
        %v785 = vshrl.u32 %v774, 16
        %v787 = vshll.u32 %v774, 16
        %v789 = vrot.slane %v787, 1
        %v790 = vor.u32 %v785, %v789
        %v792 = vshll.u32 %v775, 16
        %v794 = vrot.slane %v792, 1
        %v795 = vsel %vm783, %v790, %v794
        %v796 = vshrl.u32 %v775, 16
        %v798 = vor.u32 %v796, %v794
        %v800 = vshll.u32 %v776, 16
        %v802 = vrot.slane %v800, 1
        %v803 = vsel %vm783, %v798, %v802
        %v804 = vshrl.u32 %v776, 16
        %v806 = vor.u32 %v804, %v802
        %v808 = vshll.u32 %v777, 16
        %v810 = vrot.slane %v808, 1
        %v811 = vsel %vm783, %v806, %v810
        %v812 = vshrl.u32 %v777, 16
        %v814 = vor.u32 %v812, %v810
        %v816 = vshll.u32 %v778, 16
        %v818 = vrot.slane %v816, 1
        %v819 = vsel %vm783, %v814, %v818
        %v820 = vshrl.u32 %v778, 16
        %v822 = vor.u32 %v820, %v818
        %v824 = vshll.u32 %v779, 16
        %v826 = vrot.slane %v824, 1
        %v827 = vsel %vm783, %v822, %v826
        %v828 = vshrl.u32 %v779, 16
        %v830 = vor.u32 %v828, %v826
        %v832 = vshll.u32 %v780, 16
        %v834 = vrot.slane %v832, 1
        %v835 = vsel %vm783, %v830, %v834
        %v836 = vshrl.u32 %v780, 16
        %v838 = vor.u32 %v836, %v834
        %v840 = vshll.u32 %v781, 16
        %v842 = vrot.slane %v840, 1
        %v843 = vsel %vm783, %v838, %v842
        %v844 = vshrl.u32 %v781, 16
        %v846 = vor.u32 %v844, %v842
        %v848 = vshll.u32 %v782, 16
        %v850 = vrot.slane %v848, 1
        %v851 = vsel %vm783, %v846, %v850
        %v852 = vshrl.u32 %v782, 16
        %v854 = vor.u32 %v852, %v850
        %v880 = vunpack.c.l.b16 %v722
        %v881 = vunpack.c.l.b16 %v723
        %v882 = vunpack.c.l.b16 %v724
        %v883 = vunpack.c.l.b16 %v725
        %v884 = vunpack.c.l.b16 %v726
        %v885 = vunpack.c.l.b16 %v727
        %v886 = vunpack.c.l.b16 %v728
        %v887 = vunpack.c.l.b16 %v729
        %v888 = vunpack.c.l.b16 %v730
        %v889 = vunpack.c.l.b16 %v731
        %v890 = vunpack.c.l.b16 %v732
        %v891 = vunpack.c.l.b16 %v733
        %v892 = vunpack.c.l.b16 %v734
        %v893 = vunpack.c.l.b16 %v735
        %v894 = vunpack.c.l.b16 %v736
        %v895 = vunpack.c.l.b16 %v737
        %v896 = vpack.c.b16 %v881, %v880
        %v897 = vpack.c.b16 %v883, %v882
        %v898 = vpack.c.b16 %v885, %v884
        %v899 = vpack.c.b16 %v887, %v886
        %v900 = vpack.c.b16 %v889, %v888
        %v901 = vpack.c.b16 %v891, %v890
        %v902 = vpack.c.b16 %v893, %v892
        %v903 = vpack.c.b16 %v895, %v894
        %912 = vmatpush.bf16.msra.mxu0 %v903
        %913 = vmatpush.bf16.msra.mxu0 %v902
        %914 = vmatpush.bf16.msra.mxu0 %v901
        %915 = vmatpush.bf16.msra.mxu0 %v900
        %916 = vmatpush.bf16.msra.mxu0 %v899
        %917 = vmatpush.bf16.msra.mxu0 %v898
        %918 = vmatpush.bf16.msra.mxu0 %v897
        %919 = vmatpush.bf16.msra.mxu0 %v896
        %920 = vmatmul.bf16.gmra.mxu0 %v795
        %v921 = vpop.f32.mrf.mxu0
        %v922 = vadd.f32 0.0, %v921
        %v923 = vpop.f32.mrf.mxu0
        %v924 = vadd.f32 0.0, %v923
        %925 = vmatmul.bf16.gmra.mxu0 %v803
        %v926 = vpop.f32.mrf.mxu0
        %v927 = vadd.f32 0.0, %v926
        %v928 = vpop.f32.mrf.mxu0
        %v929 = vadd.f32 0.0, %v928
        %930 = vmatmul.bf16.gmra.mxu0 %v811
        %v931 = vpop.f32.mrf.mxu0
        %v932 = vadd.f32 0.0, %v931
        %v933 = vpop.f32.mrf.mxu0
        %v934 = vadd.f32 0.0, %v933
        %935 = vmatmul.bf16.gmra.mxu0 %v819
        %v936 = vpop.f32.mrf.mxu0
        %v937 = vadd.f32 0.0, %v936
        %v938 = vpop.f32.mrf.mxu0
        %v939 = vadd.f32 0.0, %v938
        %940 = vmatmul.bf16.gmra.mxu0 %v827
        %v941 = vpop.f32.mrf.mxu0
        %v942 = vadd.f32 0.0, %v941
        %v943 = vpop.f32.mrf.mxu0
        %v944 = vadd.f32 0.0, %v943
        %945 = vmatmul.bf16.gmra.mxu0 %v835
        %v946 = vpop.f32.mrf.mxu0
        %v947 = vadd.f32 0.0, %v946
        %v948 = vpop.f32.mrf.mxu0
        %v949 = vadd.f32 0.0, %v948
        %950 = vmatmul.bf16.gmra.mxu0 %v843
        %v951 = vpop.f32.mrf.mxu0
        %v952 = vadd.f32 0.0, %v951
        %v953 = vpop.f32.mrf.mxu0
        %v954 = vadd.f32 0.0, %v953
        %955 = vmatmul.bf16.gmra.mxu0 %v851
        %v956 = vpop.f32.mrf.mxu0
        %v957 = vadd.f32 0.0, %v956
        %v958 = vpop.f32.mrf.mxu0
        %v959 = vadd.f32 0.0, %v958
        %960 = vmatmul.bf16.gmra.mxu0 %v854
        %v961 = vpop.f32.mrf.mxu0
        %v962 = vadd.f32 0.0, %v961
        %v963 = vpop.f32.mrf.mxu0
        %v964 = vadd.f32 0.0, %v963
        %965 = vdwg.mxu0
        %v967 = vunpack.c.l.b16 %v703
        %v968 = vpack.c.b16 %v967, %v772
        %v994 = vunpack.c.l.b16 %v704
        %v995 = vunpack.c.l.b16 %v705
        %v996 = vunpack.c.l.b16 %v706
        %v997 = vunpack.c.l.b16 %v707
        %v998 = vunpack.c.l.b16 %v708
        %v999 = vunpack.c.l.b16 %v709
        %v1000 = vunpack.c.l.b16 %v710
        %v1001 = vunpack.c.l.b16 %v711
        %v1002 = vunpack.c.l.b16 %v712
        %v1003 = vunpack.c.l.b16 %v713
        %v1004 = vunpack.c.l.b16 %v714
        %v1005 = vunpack.c.l.b16 %v715
        %v1006 = vunpack.c.l.b16 %v716
        %v1007 = vunpack.c.l.b16 %v717
        %v1008 = vunpack.c.l.b16 %v718
        %v1009 = vunpack.c.l.b16 %v719
        %v1010 = vpack.c.b16 %v995, %v994
        %v1011 = vpack.c.b16 %v997, %v996
        %v1012 = vpack.c.b16 %v999, %v998
        %v1013 = vpack.c.b16 %v1001, %v1000
        %v1014 = vpack.c.b16 %v1003, %v1002
        %v1015 = vpack.c.b16 %v1005, %v1004
        %v1016 = vpack.c.b16 %v1007, %v1006
        %v1017 = vpack.c.b16 %v1009, %v1008
        %1026 = vmatpush.bf16.msra.mxu0 %v1017
        %1027 = vmatpush.bf16.msra.mxu0 %v1016
        %1028 = vmatpush.bf16.msra.mxu0 %v1015
        %1029 = vmatpush.bf16.msra.mxu0 %v1014
        %1030 = vmatpush.bf16.msra.mxu0 %v1013
        %1031 = vmatpush.bf16.msra.mxu0 %v1012
        %1032 = vmatpush.bf16.msra.mxu0 %v1011
        %1033 = vmatpush.bf16.msra.mxu0 %v1010
        %1034 = vmatmul.bf16.gmra.mxu0 %v774
        %v1035 = vpop.f32.mrf.mxu0
        %v1036 = vadd.f32 %v922, %v1035
        %v1037 = vpop.f32.mrf.mxu0
        %v1038 = vadd.f32 %v924, %v1037
        %1039 = vmatmul.bf16.gmra.mxu0 %v775
        %v1040 = vpop.f32.mrf.mxu0
        %v1041 = vadd.f32 %v927, %v1040
        %v1042 = vpop.f32.mrf.mxu0
        %v1043 = vadd.f32 %v929, %v1042
        %1044 = vmatmul.bf16.gmra.mxu0 %v776
        %v1045 = vpop.f32.mrf.mxu0
        %v1046 = vadd.f32 %v932, %v1045
        %v1047 = vpop.f32.mrf.mxu0
        %v1048 = vadd.f32 %v934, %v1047
        %1049 = vmatmul.bf16.gmra.mxu0 %v777
        %v1050 = vpop.f32.mrf.mxu0
        %v1051 = vadd.f32 %v937, %v1050
        %v1052 = vpop.f32.mrf.mxu0
        %v1053 = vadd.f32 %v939, %v1052
        %1054 = vmatmul.bf16.gmra.mxu0 %v778
        %v1055 = vpop.f32.mrf.mxu0
        %v1056 = vadd.f32 %v942, %v1055
        %v1057 = vpop.f32.mrf.mxu0
        %v1058 = vadd.f32 %v944, %v1057
        %1059 = vmatmul.bf16.gmra.mxu0 %v779
        %v1060 = vpop.f32.mrf.mxu0
        %v1061 = vadd.f32 %v947, %v1060
        %v1062 = vpop.f32.mrf.mxu0
        %v1063 = vadd.f32 %v949, %v1062
        %1064 = vmatmul.bf16.gmra.mxu0 %v780
        %v1065 = vpop.f32.mrf.mxu0
        %v1066 = vadd.f32 %v952, %v1065
        %v1067 = vpop.f32.mrf.mxu0
        %v1068 = vadd.f32 %v954, %v1067
        %1069 = vmatmul.bf16.gmra.mxu0 %v781
        %v1070 = vpop.f32.mrf.mxu0
        %v1071 = vadd.f32 %v957, %v1070
        %v1072 = vpop.f32.mrf.mxu0
        %v1073 = vadd.f32 %v959, %v1072
        %1074 = vmatmul.bf16.gmra.mxu0 %v968
        %v1075 = vpop.f32.mrf.mxu0
        %v1076 = vadd.f32 %v962, %v1075
        %v1077 = vpop.f32.mrf.mxu0
        %v1078 = vadd.f32 %v964, %v1077
        %1079 = vdwg.mxu0
        %v1080 = vld [vmem:[#allocation2] sm:$0xe]
        %s1081 = scalar_lea.vmem [#allocation7], 128
        %v1082 = vld [vmem:[%s1081] sm:$0xf]
        %v1083 = vld [vmem:[%s1081 + $0x4] sm:$0xf]
        %v1084 = vld [vmem:[%s1081 + $0x8] sm:$0xf]
        %v1085 = vld [vmem:[%s1081 + $0xc] sm:$0xf]
        %v1086 = vld [vmem:[%s1081 + $0x10] sm:$0xf]
        %v1087 = vld [vmem:[%s1081 + $0x14] sm:$0xf]
        %v1088 = vld [vmem:[%s1081 + $0x18] sm:$0xf]
        %v1089 = vld [vmem:[%s1081 + $0x1c] sm:$0xf]
        %v1090 = vld [vmem:[%s1081 + $0x20] sm:$0xf]
        %v1091 = vld [vmem:[%s1081 + $0x24] sm:$0xf]
        %v1092 = vld [vmem:[%s1081 + $0x28] sm:$0xf]
        %v1093 = vld [vmem:[%s1081 + $0x2c] sm:$0xf]
        %v1094 = vld [vmem:[%s1081 + $0x30] sm:$0xf]
        %v1095 = vld [vmem:[%s1081 + $0x34] sm:$0xf]
        %v1096 = vld [vmem:[%s1081 + $0x38] sm:$0xf]
        %v1097 = vld [vmem:[%s1081 + $0x3c] sm:$0xf]
        %v1099 = vunpack.c.l.b16 %v1080
        %v1100 = vpack.c.b16 %v757, %v1099
        %vm1101 = vcmask 1046528
        %v1102 = vrot.slane %v1100, 1
        %v1103 = vrot.slane %v775, 1
        %v1104 = vsel %vm1101, %v1102, %v1103
        %v1105 = vrot.slane %v776, 1
        %v1106 = vsel %vm1101, %v1103, %v1105
        %v1107 = vrot.slane %v777, 1
        %v1108 = vsel %vm1101, %v1105, %v1107
        %v1109 = vrot.slane %v778, 1
        %v1110 = vsel %vm1101, %v1107, %v1109
        %v1111 = vrot.slane %v779, 1
        %v1112 = vsel %vm1101, %v1109, %v1111
        %v1113 = vrot.slane %v780, 1
        %v1114 = vsel %vm1101, %v1111, %v1113
        %v1115 = vrot.slane %v781, 1
        %v1116 = vsel %vm1101, %v1113, %v1115
        %v1117 = vrot.slane %v782, 1
        %v1118 = vsel %vm1101, %v1115, %v1117
        %v1144 = vunpack.c.l.b16 %v1082
        %v1145 = vunpack.c.l.b16 %v1083
        %v1146 = vunpack.c.l.b16 %v1084
        %v1147 = vunpack.c.l.b16 %v1085
        %v1148 = vunpack.c.l.b16 %v1086
        %v1149 = vunpack.c.l.b16 %v1087
        %v1150 = vunpack.c.l.b16 %v1088
        %v1151 = vunpack.c.l.b16 %v1089
        %v1152 = vunpack.c.l.b16 %v1090
        %v1153 = vunpack.c.l.b16 %v1091
        %v1154 = vunpack.c.l.b16 %v1092
        %v1155 = vunpack.c.l.b16 %v1093
        %v1156 = vunpack.c.l.b16 %v1094
        %v1157 = vunpack.c.l.b16 %v1095
        %v1158 = vunpack.c.l.b16 %v1096
        %v1159 = vunpack.c.l.b16 %v1097
        %v1160 = vpack.c.b16 %v1145, %v1144
        %v1161 = vpack.c.b16 %v1147, %v1146
        %v1162 = vpack.c.b16 %v1149, %v1148
        %v1163 = vpack.c.b16 %v1151, %v1150
        %v1164 = vpack.c.b16 %v1153, %v1152
        %v1165 = vpack.c.b16 %v1155, %v1154
        %v1166 = vpack.c.b16 %v1157, %v1156
        %v1167 = vpack.c.b16 %v1159, %v1158
        %1176 = vmatpush.bf16.msra.mxu0 %v1167
        %1177 = vmatpush.bf16.msra.mxu0 %v1166
        %1178 = vmatpush.bf16.msra.mxu0 %v1165
        %1179 = vmatpush.bf16.msra.mxu0 %v1164
        %1180 = vmatpush.bf16.msra.mxu0 %v1163
        %1181 = vmatpush.bf16.msra.mxu0 %v1162
        %1182 = vmatpush.bf16.msra.mxu0 %v1161
        %1183 = vmatpush.bf16.msra.mxu0 %v1160
        %1184 = vmatmul.bf16.gmra.mxu0 %v1104
        %v1185 = vpop.f32.mrf.mxu0
        %v1186 = vadd.f32 0.0, %v1185
        %v1187 = vpop.f32.mrf.mxu0
        %v1188 = vadd.f32 0.0, %v1187
        %1189 = vmatmul.bf16.gmra.mxu0 %v1106
        %v1190 = vpop.f32.mrf.mxu0
        %v1191 = vadd.f32 0.0, %v1190
        %v1192 = vpop.f32.mrf.mxu0
        %v1193 = vadd.f32 0.0, %v1192
        %1194 = vmatmul.bf16.gmra.mxu0 %v1108
        %v1195 = vpop.f32.mrf.mxu0
        %v1196 = vadd.f32 0.0, %v1195
        %v1197 = vpop.f32.mrf.mxu0
        %v1198 = vadd.f32 0.0, %v1197
        %1199 = vmatmul.bf16.gmra.mxu0 %v1110
        %v1200 = vpop.f32.mrf.mxu0
        %v1201 = vadd.f32 0.0, %v1200
        %v1202 = vpop.f32.mrf.mxu0
        %v1203 = vadd.f32 0.0, %v1202
        %1204 = vmatmul.bf16.gmra.mxu0 %v1112
        %v1205 = vpop.f32.mrf.mxu0
        %v1206 = vadd.f32 0.0, %v1205
        %v1207 = vpop.f32.mrf.mxu0
        %v1208 = vadd.f32 0.0, %v1207
        %1209 = vmatmul.bf16.gmra.mxu0 %v1114
        %v1210 = vpop.f32.mrf.mxu0
        %v1211 = vadd.f32 0.0, %v1210
        %v1212 = vpop.f32.mrf.mxu0
        %v1213 = vadd.f32 0.0, %v1212
        %1214 = vmatmul.bf16.gmra.mxu0 %v1116
        %v1215 = vpop.f32.mrf.mxu0
        %v1216 = vadd.f32 0.0, %v1215
        %v1217 = vpop.f32.mrf.mxu0
        %v1218 = vadd.f32 0.0, %v1217
        %1219 = vmatmul.bf16.gmra.mxu0 %v1118
        %v1220 = vpop.f32.mrf.mxu0
        %v1221 = vadd.f32 0.0, %v1220
        %v1222 = vpop.f32.mrf.mxu0
        %v1223 = vadd.f32 0.0, %v1222
        %1224 = vmatmul.bf16.gmra.mxu0 %v1117
        %v1225 = vpop.f32.mrf.mxu0
        %v1226 = vadd.f32 0.0, %v1225
        %v1227 = vpop.f32.mrf.mxu0
        %v1228 = vadd.f32 0.0, %v1227
        %1229 = vdwg.mxu0
        %v1230 = vadd.f32 %v1036, %v1186
        %v1231 = vadd.f32 %v1038, %v1188
        %v1232 = vadd.f32 %v1041, %v1191
        %v1233 = vadd.f32 %v1043, %v1193
        %v1234 = vadd.f32 %v1046, %v1196
        %v1235 = vadd.f32 %v1048, %v1198
        %v1236 = vadd.f32 %v1051, %v1201
        %v1237 = vadd.f32 %v1053, %v1203
        %v1238 = vadd.f32 %v1056, %v1206
        %v1239 = vadd.f32 %v1058, %v1208
        %v1240 = vadd.f32 %v1061, %v1211
        %v1241 = vadd.f32 %v1063, %v1213
        %v1242 = vadd.f32 %v1066, %v1216
        %v1243 = vadd.f32 %v1068, %v1218
        %v1244 = vadd.f32 %v1071, %v1221
        %v1245 = vadd.f32 %v1073, %v1223
        %v1246 = vadd.f32 %v1076, %v1226
        %v1247 = vadd.f32 %v1078, %v1228
        %v1249 = vperm.slane %v684, 0
        %v1251 = vadd.f32 %v1230, %v1249
        %v1252 = vadd.f32 %v1231, %v1249
        %v1253 = vadd.f32 %v1232, %v1249
        %v1254 = vadd.f32 %v1233, %v1249
        %v1255 = vadd.f32 %v1234, %v1249
        %v1256 = vadd.f32 %v1235, %v1249
        %v1257 = vadd.f32 %v1236, %v1249
        %v1258 = vadd.f32 %v1237, %v1249
        %v1259 = vadd.f32 %v1238, %v1249
        %v1260 = vadd.f32 %v1239, %v1249
        %v1261 = vadd.f32 %v1240, %v1249
        %v1262 = vadd.f32 %v1241, %v1249
        %v1263 = vadd.f32 %v1242, %v1249
        %v1264 = vadd.f32 %v1243, %v1249
        %v1265 = vadd.f32 %v1244, %v1249
        %v1266 = vadd.f32 %v1245, %v1249
        %v1267 = vadd.f32 %v1246, %v1249
        %v1268 = vadd.f32 %v1247, %v1249
        %v1269 = vmax.f32 %v1251, 0.0
        %v1270 = vmax.f32 %v1252, 0.0
        %v1271 = vmax.f32 %v1253, 0.0
        %v1272 = vmax.f32 %v1254, 0.0
        %v1273 = vmax.f32 %v1255, 0.0
        %v1274 = vmax.f32 %v1256, 0.0
        %v1275 = vmax.f32 %v1257, 0.0
        %v1276 = vmax.f32 %v1258, 0.0
        %v1277 = vmax.f32 %v1259, 0.0
        %v1278 = vmax.f32 %v1260, 0.0
        %v1279 = vmax.f32 %v1261, 0.0
        %v1280 = vmax.f32 %v1262, 0.0
        %v1281 = vmax.f32 %v1263, 0.0
        %v1282 = vmax.f32 %v1264, 0.0
        %v1283 = vmax.f32 %v1265, 0.0
        %v1284 = vmax.f32 %v1266, 0.0
        %v1285 = vmax.f32 %v1267, 0.0
        %v1286 = vmax.f32 %v1268, 0.0
        %v1287 = vpack.c.bf16 %v1269, %v1269
        %v1288 = vpack.c.bf16 %v1270, %v1270
        %v1289 = vpack.c.bf16 %v1271, %v1271
        %v1290 = vpack.c.bf16 %v1272, %v1272
        %v1291 = vpack.c.bf16 %v1273, %v1273
        %v1292 = vpack.c.bf16 %v1274, %v1274
        %v1293 = vpack.c.bf16 %v1275, %v1275
        %v1294 = vpack.c.bf16 %v1276, %v1276
        %v1295 = vpack.c.bf16 %v1277, %v1277
        %v1296 = vpack.c.bf16 %v1278, %v1278
        %v1297 = vpack.c.bf16 %v1279, %v1279
        %v1298 = vpack.c.bf16 %v1280, %v1280
        %v1299 = vpack.c.bf16 %v1281, %v1281
        %v1300 = vpack.c.bf16 %v1282, %v1282
        %v1301 = vpack.c.bf16 %v1283, %v1283
        %v1302 = vpack.c.bf16 %v1284, %v1284
        %v1303 = vpack.c.bf16 %v1285, %v1285
        %v1304 = vpack.c.bf16 %v1286, %v1286
        %v1306 = vshrl.u32 %v1287, 16
        %v1308 = vrot.slane %v1306, 7
        %v1309 = vshll.u32 %v1287, 16
        %v1311 = vor.u32 %v1308, %v1309
        %v1312 = vrot.slane %v1308, 4
        %v1314 = vshrl.u32 %v1288, 16
        %v1316 = vrot.slane %v1314, 7
        %v1317 = vshll.u32 %v1288, 16
        %v1319 = vor.u32 %v1316, %v1317
        %v1320 = vsel %vm304, %v1312, %v1319
        %v1321 = vrot.slane %v1316, 4
        %v1325 = vld [vmem:[#allocation3] sm:$0xf]
        %v1326 = vsel %vm326, %v1311, %v1325
        %1327 = vst [vmem:[#allocation3] sm:$0xf] %v1326
        %1328 = vst [vmem:[#allocation3 + $0x4] sm:$0xf] %v1320
        %v1329 = vld [vmem:[#allocation3 + $0x8] sm:$0x1]
        %v1330 = vsel %vm284, %v1321, %v1329
        %1331 = vst [vmem:[#allocation3 + $0x8] sm:$0x1] %v1330
        %v1333 = vshrl.u32 %v1289, 16
        %v1335 = vrot.slane %v1333, 7
        %v1336 = vshll.u32 %v1289, 16
        %v1338 = vor.u32 %v1335, %v1336
        %v1339 = vrot.slane %v1335, 4
        %v1341 = vshrl.u32 %v1290, 16
        %v1343 = vrot.slane %v1341, 7
        %v1344 = vshll.u32 %v1290, 16
        %v1346 = vor.u32 %v1343, %v1344
        %v1347 = vsel %vm304, %v1339, %v1346
        %v1348 = vrot.slane %v1343, 4
        %v1350 = vshrl.u32 %v1291, 16
        %v1352 = vrot.slane %v1350, 7
        %v1353 = vshll.u32 %v1291, 16
        %v1355 = vor.u32 %v1352, %v1353
        %v1356 = vsel %vm304, %v1348, %v1355
        %v1360 = vld [vmem:[#allocation3 + $0x8] sm:$0xe]
        %v1361 = vsel %vm381, %v1338, %v1360
        %1362 = vst [vmem:[#allocation3 + $0x8] sm:$0xe] %v1361
        %1363 = vst [vmem:[#allocation3 + $0xc] sm:$0xf] %v1347
        %v1364 = vld [vmem:[#allocation3 + $0x10] sm:$0x3]
        %v1365 = vsel %vm387, %v1356, %v1364
        %1366 = vst [vmem:[#allocation3 + $0x10] sm:$0x3] %v1365
        %v1367 = vrot.slane %v1352, 4
        %v1369 = vshrl.u32 %v1292, 16
        %v1371 = vrot.slane %v1369, 7
        %v1372 = vshll.u32 %v1292, 16
        %v1374 = vor.u32 %v1371, %v1372
        %v1375 = vsel %vm304, %v1367, %v1374
        %v1376 = vrot.slane %v1371, 4
        %v1378 = vshrl.u32 %v1293, 16
        %v1380 = vrot.slane %v1378, 7
        %v1381 = vshll.u32 %v1293, 16
        %v1383 = vor.u32 %v1380, %v1381
        %v1384 = vsel %vm304, %v1376, %v1383
        %v1388 = vld [vmem:[#allocation3 + $0x10] sm:$0xc]
        %v1389 = vsel %vm438, %v1355, %v1388
        %1390 = vst [vmem:[#allocation3 + $0x10] sm:$0xc] %v1389
        %1391 = vst [vmem:[#allocation3 + $0x14] sm:$0xf] %v1375
        %v1392 = vld [vmem:[#allocation3 + $0x18] sm:$0x7]
        %v1393 = vsel %vm444, %v1384, %v1392
        %1394 = vst [vmem:[#allocation3 + $0x18] sm:$0x7] %v1393
        %v1395 = vrot.slane %v1380, 4
        %v1397 = vshrl.u32 %v1294, 16
        %v1399 = vrot.slane %v1397, 7
        %v1400 = vshll.u32 %v1294, 16
        %v1402 = vor.u32 %v1399, %v1400
        %v1403 = vsel %vm304, %v1395, %v1402
        %v1404 = vrot.slane %v1399, 4
        %v1406 = vshrl.u32 %v1295, 16
        %v1408 = vrot.slane %v1406, 7
        %v1409 = vshll.u32 %v1295, 16
        %v1411 = vor.u32 %v1408, %v1409
        %v1412 = vsel %vm304, %v1404, %v1411
        %v1416 = vld [vmem:[#allocation3 + $0x18] sm:$0x8]
        %v1417 = vsel %vm455, %v1381, %v1416
        %1418 = vst [vmem:[#allocation3 + $0x18] sm:$0x8] %v1417
        %1419 = vst [vmem:[#allocation3 + $0x1c] sm:$0xf] %v1403
        %v1420 = vld [vmem:[#allocation3 + $0x20] sm:$0xf]
        %v1421 = vsel %vm498, %v1412, %v1420
        %1422 = vst [vmem:[#allocation3 + $0x20] sm:$0xf] %v1421
        %v1424 = vshrl.u32 %v1296, 16
        %v1426 = vrot.slane %v1424, 7
        %v1427 = vshll.u32 %v1296, 16
        %v1429 = vor.u32 %v1426, %v1427
        %v1430 = vrot.slane %v1426, 4
        %v1432 = vshrl.u32 %v1297, 16
        %v1434 = vrot.slane %v1432, 7
        %v1435 = vshll.u32 %v1297, 16
        %v1437 = vor.u32 %v1434, %v1435
        %v1438 = vsel %vm304, %v1430, %v1437
        %v1439 = vrot.slane %v1434, 4
        %v1443 = vld [vmem:[#allocation3 + $0x24] sm:$0xf]
        %v1444 = vsel %vm326, %v1429, %v1443
        %1445 = vst [vmem:[#allocation3 + $0x24] sm:$0xf] %v1444
        %1446 = vst [vmem:[#allocation3 + $0x28] sm:$0xf] %v1438
        %v1447 = vld [vmem:[#allocation3 + $0x2c] sm:$0x1]
        %v1448 = vsel %vm284, %v1439, %v1447
        %1449 = vst [vmem:[#allocation3 + $0x2c] sm:$0x1] %v1448
        %v1451 = vshrl.u32 %v1298, 16
        %v1453 = vrot.slane %v1451, 7
        %v1454 = vshll.u32 %v1298, 16
        %v1456 = vor.u32 %v1453, %v1454
        %v1457 = vrot.slane %v1453, 4
        %v1459 = vshrl.u32 %v1299, 16
        %v1461 = vrot.slane %v1459, 7
        %v1462 = vshll.u32 %v1299, 16
        %v1464 = vor.u32 %v1461, %v1462
        %v1465 = vsel %vm304, %v1457, %v1464
        %v1466 = vrot.slane %v1461, 4
        %v1468 = vshrl.u32 %v1300, 16
        %v1470 = vrot.slane %v1468, 7
        %v1471 = vshll.u32 %v1300, 16
        %v1473 = vor.u32 %v1470, %v1471
        %v1474 = vsel %vm304, %v1466, %v1473
        %v1478 = vld [vmem:[#allocation3 + $0x2c] sm:$0xe]
        %v1479 = vsel %vm381, %v1456, %v1478
        %1480 = vst [vmem:[#allocation3 + $0x2c] sm:$0xe] %v1479
        %1481 = vst [vmem:[#allocation3 + $0x30] sm:$0xf] %v1465
        %v1482 = vld [vmem:[#allocation3 + $0x34] sm:$0x3]
        %v1483 = vsel %vm387, %v1474, %v1482
        %1484 = vst [vmem:[#allocation3 + $0x34] sm:$0x3] %v1483
        %v1485 = vrot.slane %v1470, 4
        %v1487 = vshrl.u32 %v1301, 16
        %v1489 = vrot.slane %v1487, 7
        %v1490 = vshll.u32 %v1301, 16
        %v1492 = vor.u32 %v1489, %v1490
        %v1493 = vsel %vm304, %v1485, %v1492
        %v1494 = vrot.slane %v1489, 4
        %v1496 = vshrl.u32 %v1302, 16
        %v1498 = vrot.slane %v1496, 7
        %v1499 = vshll.u32 %v1302, 16
        %v1501 = vor.u32 %v1498, %v1499
        %v1502 = vsel %vm304, %v1494, %v1501
        %v1506 = vld [vmem:[#allocation3 + $0x34] sm:$0xc]
        %v1507 = vsel %vm438, %v1473, %v1506
        %1508 = vst [vmem:[#allocation3 + $0x34] sm:$0xc] %v1507
        %1509 = vst [vmem:[#allocation3 + $0x38] sm:$0xf] %v1493
        %v1510 = vld [vmem:[#allocation3 + $0x3c] sm:$0x7]
        %v1511 = vsel %vm444, %v1502, %v1510
        %1512 = vst [vmem:[#allocation3 + $0x3c] sm:$0x7] %v1511
        %v1513 = vrot.slane %v1498, 4
        %v1515 = vshrl.u32 %v1303, 16
        %v1517 = vrot.slane %v1515, 7
        %v1518 = vshll.u32 %v1303, 16
        %v1520 = vor.u32 %v1517, %v1518
        %v1521 = vsel %vm304, %v1513, %v1520
        %v1522 = vrot.slane %v1517, 4
        %v1524 = vshrl.u32 %v1304, 16
        %v1526 = vrot.slane %v1524, 7
        %v1527 = vshll.u32 %v1304, 16
        %v1529 = vor.u32 %v1526, %v1527
        %v1530 = vsel %vm304, %v1522, %v1529
        %v1534 = vld [vmem:[#allocation3 + $0x3c] sm:$0x8]
        %v1535 = vsel %vm455, %v1499, %v1534
        %1536 = vst [vmem:[#allocation3 + $0x3c] sm:$0x8] %v1535
        %1537 = vst [vmem:[#allocation3 + $0x40] sm:$0xf] %v1521
        %v1538 = vld [vmem:[#allocation3 + $0x44] sm:$0xf]
        %v1539 = vsel %vm498, %v1530, %v1538
        %1540 = vst [vmem:[#allocation3 + $0x44] sm:$0xf] %v1539
        %v1541 = vld [vmem:[#allocation3] sm:$0xf]
        %v1542 = vld [vmem:[#allocation3 + $0x4] sm:$0xf]
        %v1543 = vld [vmem:[#allocation3 + $0x8] sm:$0xf]
        %v1544 = vld [vmem:[#allocation3 + $0xc] sm:$0xf]
        %v1545 = vld [vmem:[#allocation3 + $0x10] sm:$0xf]
        %v1546 = vld [vmem:[#allocation3 + $0x14] sm:$0xf]
        %v1547 = vld [vmem:[#allocation3 + $0x18] sm:$0xf]
        %v1548 = vld [vmem:[#allocation3 + $0x1c] sm:$0xf]
        %v1549 = vld [vmem:[#allocation3 + $0x20] sm:$0xf]
        %v1550 = vld [vmem:[#allocation3 + $0x24] sm:$0xf]
        %v1551 = vld [vmem:[#allocation3 + $0x28] sm:$0xf]
        %v1552 = vld [vmem:[#allocation3 + $0x2c] sm:$0xf]
        %v1553 = vld [vmem:[#allocation3 + $0x30] sm:$0xf]
        %v1554 = vld [vmem:[#allocation3 + $0x34] sm:$0xf]
        %v1555 = vld [vmem:[#allocation3 + $0x38] sm:$0xf]
        %v1556 = vld [vmem:[#allocation3 + $0x3c] sm:$0xf]
        %v1557 = vld [vmem:[#allocation3 + $0x40] sm:$0xf]
        %v1558 = vld [vmem:[#allocation3 + $0x44] sm:$0x7]
        %v1559 = vld [vmem:[#allocation9] sm:$0xf]
        %v1560 = vld [vmem:[#allocation9 + $0x4] sm:$0xf]
        %v1561 = vld [vmem:[#allocation9 + $0x8] sm:$0xf]
        %v1562 = vld [vmem:[#allocation9 + $0xc] sm:$0xf]
        %v1563 = vld [vmem:[#allocation9 + $0x10] sm:$0xf]
        %v1564 = vld [vmem:[#allocation9 + $0x14] sm:$0xf]
        %v1565 = vld [vmem:[#allocation9 + $0x18] sm:$0xf]
        %v1566 = vld [vmem:[#allocation9 + $0x1c] sm:$0xf]
        %v1567 = vld [vmem:[#allocation9 + $0x20] sm:$0xf]
        %v1568 = vld [vmem:[#allocation9 + $0x24] sm:$0xf]
        %v1569 = vld [vmem:[#allocation9 + $0x28] sm:$0xf]
        %v1570 = vld [vmem:[#allocation9 + $0x2c] sm:$0xf]
        %v1571 = vld [vmem:[#allocation9 + $0x30] sm:$0xf]
        %v1572 = vld [vmem:[#allocation9 + $0x34] sm:$0xf]
        %v1573 = vld [vmem:[#allocation9 + $0x38] sm:$0xf]
        %v1574 = vld [vmem:[#allocation9 + $0x3c] sm:$0xf]
        %v1575 = vld [vmem:[#allocation3 + $0x44] sm:$0xf]
        %s1576 = scalar_lea.vmem [#allocation9], 64
        %v1577 = vld [vmem:[%s1576] sm:$0xf]
        %v1578 = vld [vmem:[%s1576 + $0x4] sm:$0xf]
        %v1579 = vld [vmem:[%s1576 + $0x8] sm:$0xf]
        %v1580 = vld [vmem:[%s1576 + $0xc] sm:$0xf]
        %v1581 = vld [vmem:[%s1576 + $0x10] sm:$0xf]
        %v1582 = vld [vmem:[%s1576 + $0x14] sm:$0xf]
        %v1583 = vld [vmem:[%s1576 + $0x18] sm:$0xf]
        %v1584 = vld [vmem:[%s1576 + $0x1c] sm:$0xf]
        %v1585 = vld [vmem:[%s1576 + $0x20] sm:$0xf]
        %v1586 = vld [vmem:[%s1576 + $0x24] sm:$0xf]
        %v1587 = vld [vmem:[%s1576 + $0x28] sm:$0xf]
        %v1588 = vld [vmem:[%s1576 + $0x2c] sm:$0xf]
        %v1589 = vld [vmem:[%s1576 + $0x30] sm:$0xf]
        %v1590 = vld [vmem:[%s1576 + $0x34] sm:$0xf]
        %v1591 = vld [vmem:[%s1576 + $0x38] sm:$0xf]
        %v1592 = vld [vmem:[%s1576 + $0x3c] sm:$0xf]
        %v1611 = vunpack.c.l.b16 %v1541
        %v1612 = vunpack.c.l.b16 %v1542
        %v1613 = vunpack.c.l.b16 %v1543
        %v1614 = vunpack.c.l.b16 %v1544
        %v1615 = vunpack.c.l.b16 %v1545
        %v1616 = vunpack.c.l.b16 %v1546
        %v1617 = vunpack.c.l.b16 %v1547
        %v1618 = vunpack.c.l.b16 %v1548
        %v1619 = vunpack.c.l.b16 %v1549
        %v1620 = vunpack.c.l.b16 %v1550
        %v1621 = vunpack.c.l.b16 %v1551
        %v1622 = vunpack.c.l.b16 %v1552
        %v1623 = vunpack.c.l.b16 %v1553
        %v1624 = vunpack.c.l.b16 %v1554
        %v1625 = vunpack.c.l.b16 %v1555
        %v1626 = vunpack.c.l.b16 %v1556
        %v1627 = vunpack.c.l.b16 %v1557
        %v1628 = vunpack.c.l.b16 %v1575
        %v1629 = vpack.c.b16 %v1612, %v1611
        %v1630 = vpack.c.b16 %v1614, %v1613
        %v1631 = vpack.c.b16 %v1616, %v1615
        %v1632 = vpack.c.b16 %v1618, %v1617
        %v1633 = vpack.c.b16 %v1620, %v1619
        %v1634 = vpack.c.b16 %v1622, %v1621
        %v1635 = vpack.c.b16 %v1624, %v1623
        %v1636 = vpack.c.b16 %v1626, %v1625
        %v1637 = vpack.c.b16 %v1628, %v1627
        %v1639 = vshrl.u32 %v1629, 16
        %v1641 = vshll.u32 %v1629, 16
        %v1643 = vrot.slane %v1641, 1
        %v1644 = vor.u32 %v1639, %v1643
        %v1646 = vshll.u32 %v1630, 16
        %v1648 = vrot.slane %v1646, 1
        %v1649 = vsel %vm783, %v1644, %v1648
        %v1650 = vshrl.u32 %v1630, 16
        %v1652 = vor.u32 %v1650, %v1648
        %v1654 = vshll.u32 %v1631, 16
        %v1656 = vrot.slane %v1654, 1
        %v1657 = vsel %vm783, %v1652, %v1656
        %v1658 = vshrl.u32 %v1631, 16
        %v1660 = vor.u32 %v1658, %v1656
        %v1662 = vshll.u32 %v1632, 16
        %v1664 = vrot.slane %v1662, 1
        %v1665 = vsel %vm783, %v1660, %v1664
        %v1666 = vshrl.u32 %v1632, 16
        %v1668 = vor.u32 %v1666, %v1664
        %v1670 = vshll.u32 %v1633, 16
        %v1672 = vrot.slane %v1670, 1
        %v1673 = vsel %vm783, %v1668, %v1672
        %v1674 = vshrl.u32 %v1633, 16
        %v1676 = vor.u32 %v1674, %v1672
        %v1678 = vshll.u32 %v1634, 16
        %v1680 = vrot.slane %v1678, 1
        %v1681 = vsel %vm783, %v1676, %v1680
        %v1682 = vshrl.u32 %v1634, 16
        %v1684 = vor.u32 %v1682, %v1680
        %v1686 = vshll.u32 %v1635, 16
        %v1688 = vrot.slane %v1686, 1
        %v1689 = vsel %vm783, %v1684, %v1688
        %v1690 = vshrl.u32 %v1635, 16
        %v1692 = vor.u32 %v1690, %v1688
        %v1694 = vshll.u32 %v1636, 16
        %v1696 = vrot.slane %v1694, 1
        %v1697 = vsel %vm783, %v1692, %v1696
        %v1698 = vshrl.u32 %v1636, 16
        %v1700 = vor.u32 %v1698, %v1696
        %v1702 = vshll.u32 %v1637, 16
        %v1704 = vrot.slane %v1702, 1
        %v1705 = vsel %vm783, %v1700, %v1704
        %v1706 = vshrl.u32 %v1637, 16
        %v1708 = vor.u32 %v1706, %v1704
        %v1734 = vunpack.c.l.b16 %v1577
        %v1735 = vunpack.c.l.b16 %v1578
        %v1736 = vunpack.c.l.b16 %v1579
        %v1737 = vunpack.c.l.b16 %v1580
        %v1738 = vunpack.c.l.b16 %v1581
        %v1739 = vunpack.c.l.b16 %v1582
        %v1740 = vunpack.c.l.b16 %v1583
        %v1741 = vunpack.c.l.b16 %v1584
        %v1742 = vunpack.c.l.b16 %v1585
        %v1743 = vunpack.c.l.b16 %v1586
        %v1744 = vunpack.c.l.b16 %v1587
        %v1745 = vunpack.c.l.b16 %v1588
        %v1746 = vunpack.c.l.b16 %v1589
        %v1747 = vunpack.c.l.b16 %v1590
        %v1748 = vunpack.c.l.b16 %v1591
        %v1749 = vunpack.c.l.b16 %v1592
        %v1750 = vpack.c.b16 %v1735, %v1734
        %v1751 = vpack.c.b16 %v1737, %v1736
        %v1752 = vpack.c.b16 %v1739, %v1738
        %v1753 = vpack.c.b16 %v1741, %v1740
        %v1754 = vpack.c.b16 %v1743, %v1742
        %v1755 = vpack.c.b16 %v1745, %v1744
        %v1756 = vpack.c.b16 %v1747, %v1746
        %v1757 = vpack.c.b16 %v1749, %v1748
        %1766 = vmatpush.bf16.msra.mxu0 %v1757
        %1767 = vmatpush.bf16.msra.mxu0 %v1756
        %1768 = vmatpush.bf16.msra.mxu0 %v1755
        %1769 = vmatpush.bf16.msra.mxu0 %v1754
        %1770 = vmatpush.bf16.msra.mxu0 %v1753
        %1771 = vmatpush.bf16.msra.mxu0 %v1752
        %1772 = vmatpush.bf16.msra.mxu0 %v1751
        %1773 = vmatpush.bf16.msra.mxu0 %v1750
        %1774 = vmatmul.bf16.gmra.mxu0 %v1649
        %v1775 = vpop.f32.mrf.mxu0
        %v1776 = vadd.f32 0.0, %v1775
        %v1777 = vpop.f32.mrf.mxu0
        %v1778 = vadd.f32 0.0, %v1777
        %1779 = vmatmul.bf16.gmra.mxu0 %v1657
        %v1780 = vpop.f32.mrf.mxu0
        %v1781 = vadd.f32 0.0, %v1780
        %v1782 = vpop.f32.mrf.mxu0
        %v1783 = vadd.f32 0.0, %v1782
        %1784 = vmatmul.bf16.gmra.mxu0 %v1665
        %v1785 = vpop.f32.mrf.mxu0
        %v1786 = vadd.f32 0.0, %v1785
        %v1787 = vpop.f32.mrf.mxu0
        %v1788 = vadd.f32 0.0, %v1787
        %1789 = vmatmul.bf16.gmra.mxu0 %v1673
        %v1790 = vpop.f32.mrf.mxu0
        %v1791 = vadd.f32 0.0, %v1790
        %v1792 = vpop.f32.mrf.mxu0
        %v1793 = vadd.f32 0.0, %v1792
        %1794 = vmatmul.bf16.gmra.mxu0 %v1681
        %v1795 = vpop.f32.mrf.mxu0
        %v1796 = vadd.f32 0.0, %v1795
        %v1797 = vpop.f32.mrf.mxu0
        %v1798 = vadd.f32 0.0, %v1797
        %1799 = vmatmul.bf16.gmra.mxu0 %v1689
        %v1800 = vpop.f32.mrf.mxu0
        %v1801 = vadd.f32 0.0, %v1800
        %v1802 = vpop.f32.mrf.mxu0
        %v1803 = vadd.f32 0.0, %v1802
        %1804 = vmatmul.bf16.gmra.mxu0 %v1697
        %v1805 = vpop.f32.mrf.mxu0
        %v1806 = vadd.f32 0.0, %v1805
        %v1807 = vpop.f32.mrf.mxu0
        %v1808 = vadd.f32 0.0, %v1807
        %1809 = vmatmul.bf16.gmra.mxu0 %v1705
        %v1810 = vpop.f32.mrf.mxu0
        %v1811 = vadd.f32 0.0, %v1810
        %v1812 = vpop.f32.mrf.mxu0
        %v1813 = vadd.f32 0.0, %v1812
        %1814 = vmatmul.bf16.gmra.mxu0 %v1708
        %v1815 = vpop.f32.mrf.mxu0
        %v1816 = vadd.f32 0.0, %v1815
        %v1817 = vpop.f32.mrf.mxu0
        %v1818 = vadd.f32 0.0, %v1817
        %1819 = vdwg.mxu0
        %v1821 = vunpack.c.l.b16 %v1558
        %v1822 = vpack.c.b16 %v1821, %v1627
        %v1848 = vunpack.c.l.b16 %v1559
        %v1849 = vunpack.c.l.b16 %v1560
        %v1850 = vunpack.c.l.b16 %v1561
        %v1851 = vunpack.c.l.b16 %v1562
        %v1852 = vunpack.c.l.b16 %v1563
        %v1853 = vunpack.c.l.b16 %v1564
        %v1854 = vunpack.c.l.b16 %v1565
        %v1855 = vunpack.c.l.b16 %v1566
        %v1856 = vunpack.c.l.b16 %v1567
        %v1857 = vunpack.c.l.b16 %v1568
        %v1858 = vunpack.c.l.b16 %v1569
        %v1859 = vunpack.c.l.b16 %v1570
        %v1860 = vunpack.c.l.b16 %v1571
        %v1861 = vunpack.c.l.b16 %v1572
        %v1862 = vunpack.c.l.b16 %v1573
        %v1863 = vunpack.c.l.b16 %v1574
        %v1864 = vpack.c.b16 %v1849, %v1848
        %v1865 = vpack.c.b16 %v1851, %v1850
        %v1866 = vpack.c.b16 %v1853, %v1852
        %v1867 = vpack.c.b16 %v1855, %v1854
        %v1868 = vpack.c.b16 %v1857, %v1856
        %v1869 = vpack.c.b16 %v1859, %v1858
        %v1870 = vpack.c.b16 %v1861, %v1860
        %v1871 = vpack.c.b16 %v1863, %v1862
        %1880 = vmatpush.bf16.msra.mxu0 %v1871
        %1881 = vmatpush.bf16.msra.mxu0 %v1870
        %1882 = vmatpush.bf16.msra.mxu0 %v1869
        %1883 = vmatpush.bf16.msra.mxu0 %v1868
        %1884 = vmatpush.bf16.msra.mxu0 %v1867
        %1885 = vmatpush.bf16.msra.mxu0 %v1866
        %1886 = vmatpush.bf16.msra.mxu0 %v1865
        %1887 = vmatpush.bf16.msra.mxu0 %v1864
        %1888 = vmatmul.bf16.gmra.mxu0 %v1629
        %v1889 = vpop.f32.mrf.mxu0
        %v1890 = vadd.f32 %v1776, %v1889
        %v1891 = vpop.f32.mrf.mxu0
        %v1892 = vadd.f32 %v1778, %v1891
        %1893 = vmatmul.bf16.gmra.mxu0 %v1630
        %v1894 = vpop.f32.mrf.mxu0
        %v1895 = vadd.f32 %v1781, %v1894
        %v1896 = vpop.f32.mrf.mxu0
        %v1897 = vadd.f32 %v1783, %v1896
        %1898 = vmatmul.bf16.gmra.mxu0 %v1631
        %v1899 = vpop.f32.mrf.mxu0
        %v1900 = vadd.f32 %v1786, %v1899
        %v1901 = vpop.f32.mrf.mxu0
        %v1902 = vadd.f32 %v1788, %v1901
        %1903 = vmatmul.bf16.gmra.mxu0 %v1632
        %v1904 = vpop.f32.mrf.mxu0
        %v1905 = vadd.f32 %v1791, %v1904
        %v1906 = vpop.f32.mrf.mxu0
        %v1907 = vadd.f32 %v1793, %v1906
        %1908 = vmatmul.bf16.gmra.mxu0 %v1633
        %v1909 = vpop.f32.mrf.mxu0
        %v1910 = vadd.f32 %v1796, %v1909
        %v1911 = vpop.f32.mrf.mxu0
        %v1912 = vadd.f32 %v1798, %v1911
        %1913 = vmatmul.bf16.gmra.mxu0 %v1634
        %v1914 = vpop.f32.mrf.mxu0
        %v1915 = vadd.f32 %v1801, %v1914
        %v1916 = vpop.f32.mrf.mxu0
        %v1917 = vadd.f32 %v1803, %v1916
        %1918 = vmatmul.bf16.gmra.mxu0 %v1635
        %v1919 = vpop.f32.mrf.mxu0
        %v1920 = vadd.f32 %v1806, %v1919
        %v1921 = vpop.f32.mrf.mxu0
        %v1922 = vadd.f32 %v1808, %v1921
        %1923 = vmatmul.bf16.gmra.mxu0 %v1636
        %v1924 = vpop.f32.mrf.mxu0
        %v1925 = vadd.f32 %v1811, %v1924
        %v1926 = vpop.f32.mrf.mxu0
        %v1927 = vadd.f32 %v1813, %v1926
        %1928 = vmatmul.bf16.gmra.mxu0 %v1822
        %v1929 = vpop.f32.mrf.mxu0
        %v1930 = vadd.f32 %v1816, %v1929
        %v1931 = vpop.f32.mrf.mxu0
        %v1932 = vadd.f32 %v1818, %v1931
        %1933 = vdwg.mxu0
        %v1934 = vld [vmem:[#allocation3] sm:$0xe]
        %s1935 = scalar_lea.vmem [#allocation9], 128
        %v1936 = vld [vmem:[%s1935] sm:$0xf]
        %v1937 = vld [vmem:[%s1935 + $0x4] sm:$0xf]
        %v1938 = vld [vmem:[%s1935 + $0x8] sm:$0xf]
        %v1939 = vld [vmem:[%s1935 + $0xc] sm:$0xf]
        %v1940 = vld [vmem:[%s1935 + $0x10] sm:$0xf]
        %v1941 = vld [vmem:[%s1935 + $0x14] sm:$0xf]
        %v1942 = vld [vmem:[%s1935 + $0x18] sm:$0xf]
        %v1943 = vld [vmem:[%s1935 + $0x1c] sm:$0xf]
        %v1944 = vld [vmem:[%s1935 + $0x20] sm:$0xf]
        %v1945 = vld [vmem:[%s1935 + $0x24] sm:$0xf]
        %v1946 = vld [vmem:[%s1935 + $0x28] sm:$0xf]
        %v1947 = vld [vmem:[%s1935 + $0x2c] sm:$0xf]
        %v1948 = vld [vmem:[%s1935 + $0x30] sm:$0xf]
        %v1949 = vld [vmem:[%s1935 + $0x34] sm:$0xf]
        %v1950 = vld [vmem:[%s1935 + $0x38] sm:$0xf]
        %v1951 = vld [vmem:[%s1935 + $0x3c] sm:$0xf]
        %v1953 = vunpack.c.l.b16 %v1934
        %v1954 = vpack.c.b16 %v1612, %v1953
        %v1955 = vrot.slane %v1954, 1
        %v1956 = vrot.slane %v1630, 1
        %v1957 = vsel %vm1101, %v1955, %v1956
        %v1958 = vrot.slane %v1631, 1
        %v1959 = vsel %vm1101, %v1956, %v1958
        %v1960 = vrot.slane %v1632, 1
        %v1961 = vsel %vm1101, %v1958, %v1960
        %v1962 = vrot.slane %v1633, 1
        %v1963 = vsel %vm1101, %v1960, %v1962
        %v1964 = vrot.slane %v1634, 1
        %v1965 = vsel %vm1101, %v1962, %v1964
        %v1966 = vrot.slane %v1635, 1
        %v1967 = vsel %vm1101, %v1964, %v1966
        %v1968 = vrot.slane %v1636, 1
        %v1969 = vsel %vm1101, %v1966, %v1968
        %v1970 = vrot.slane %v1637, 1
        %v1971 = vsel %vm1101, %v1968, %v1970
        %v1997 = vunpack.c.l.b16 %v1936
        %v1998 = vunpack.c.l.b16 %v1937
        %v1999 = vunpack.c.l.b16 %v1938
        %v2000 = vunpack.c.l.b16 %v1939
        %v2001 = vunpack.c.l.b16 %v1940
        %v2002 = vunpack.c.l.b16 %v1941
        %v2003 = vunpack.c.l.b16 %v1942
        %v2004 = vunpack.c.l.b16 %v1943
        %v2005 = vunpack.c.l.b16 %v1944
        %v2006 = vunpack.c.l.b16 %v1945
        %v2007 = vunpack.c.l.b16 %v1946
        %v2008 = vunpack.c.l.b16 %v1947
        %v2009 = vunpack.c.l.b16 %v1948
        %v2010 = vunpack.c.l.b16 %v1949
        %v2011 = vunpack.c.l.b16 %v1950
        %v2012 = vunpack.c.l.b16 %v1951
        %v2013 = vpack.c.b16 %v1998, %v1997
        %v2014 = vpack.c.b16 %v2000, %v1999
        %v2015 = vpack.c.b16 %v2002, %v2001
        %v2016 = vpack.c.b16 %v2004, %v2003
        %v2017 = vpack.c.b16 %v2006, %v2005
        %v2018 = vpack.c.b16 %v2008, %v2007
        %v2019 = vpack.c.b16 %v2010, %v2009
        %v2020 = vpack.c.b16 %v2012, %v2011
        %2029 = vmatpush.bf16.msra.mxu0 %v2020
        %2030 = vmatpush.bf16.msra.mxu0 %v2019
        %2031 = vmatpush.bf16.msra.mxu0 %v2018
        %2032 = vmatpush.bf16.msra.mxu0 %v2017
        %2033 = vmatpush.bf16.msra.mxu0 %v2016
        %2034 = vmatpush.bf16.msra.mxu0 %v2015
        %2035 = vmatpush.bf16.msra.mxu0 %v2014
        %2036 = vmatpush.bf16.msra.mxu0 %v2013
        %2037 = vmatmul.bf16.gmra.mxu0 %v1957
        %v2038 = vpop.f32.mrf.mxu0
        %v2039 = vadd.f32 0.0, %v2038
        %v2040 = vpop.f32.mrf.mxu0
        %v2041 = vadd.f32 0.0, %v2040
        %2042 = vmatmul.bf16.gmra.mxu0 %v1959
        %v2043 = vpop.f32.mrf.mxu0
        %v2044 = vadd.f32 0.0, %v2043
        %v2045 = vpop.f32.mrf.mxu0
        %v2046 = vadd.f32 0.0, %v2045
        %2047 = vmatmul.bf16.gmra.mxu0 %v1961
        %v2048 = vpop.f32.mrf.mxu0
        %v2049 = vadd.f32 0.0, %v2048
        %v2050 = vpop.f32.mrf.mxu0
        %v2051 = vadd.f32 0.0, %v2050
        %2052 = vmatmul.bf16.gmra.mxu0 %v1963
        %v2053 = vpop.f32.mrf.mxu0
        %v2054 = vadd.f32 0.0, %v2053
        %v2055 = vpop.f32.mrf.mxu0
        %v2056 = vadd.f32 0.0, %v2055
        %2057 = vmatmul.bf16.gmra.mxu0 %v1965
        %v2058 = vpop.f32.mrf.mxu0
        %v2059 = vadd.f32 0.0, %v2058
        %v2060 = vpop.f32.mrf.mxu0
        %v2061 = vadd.f32 0.0, %v2060
        %2062 = vmatmul.bf16.gmra.mxu0 %v1967
        %v2063 = vpop.f32.mrf.mxu0
        %v2064 = vadd.f32 0.0, %v2063
        %v2065 = vpop.f32.mrf.mxu0
        %v2066 = vadd.f32 0.0, %v2065
        %2067 = vmatmul.bf16.gmra.mxu0 %v1969
        %v2068 = vpop.f32.mrf.mxu0
        %v2069 = vadd.f32 0.0, %v2068
        %v2070 = vpop.f32.mrf.mxu0
        %v2071 = vadd.f32 0.0, %v2070
        %2072 = vmatmul.bf16.gmra.mxu0 %v1971
        %v2073 = vpop.f32.mrf.mxu0
        %v2074 = vadd.f32 0.0, %v2073
        %v2075 = vpop.f32.mrf.mxu0
        %v2076 = vadd.f32 0.0, %v2075
        %2077 = vmatmul.bf16.gmra.mxu0 %v1970
        %v2078 = vpop.f32.mrf.mxu0
        %v2079 = vadd.f32 0.0, %v2078
        %v2080 = vpop.f32.mrf.mxu0
        %v2081 = vadd.f32 0.0, %v2080
        %2082 = vdwg.mxu0
        %v2083 = vadd.f32 %v1890, %v2039
        %v2084 = vadd.f32 %v1892, %v2041
        %v2085 = vadd.f32 %v1895, %v2044
        %v2086 = vadd.f32 %v1897, %v2046
        %v2087 = vadd.f32 %v1900, %v2049
        %v2088 = vadd.f32 %v1902, %v2051
        %v2089 = vadd.f32 %v1905, %v2054
        %v2090 = vadd.f32 %v1907, %v2056
        %v2091 = vadd.f32 %v1910, %v2059
        %v2092 = vadd.f32 %v1912, %v2061
        %v2093 = vadd.f32 %v1915, %v2064
        %v2094 = vadd.f32 %v1917, %v2066
        %v2095 = vadd.f32 %v1920, %v2069
        %v2096 = vadd.f32 %v1922, %v2071
        %v2097 = vadd.f32 %v1925, %v2074
        %v2098 = vadd.f32 %v1927, %v2076
        %v2099 = vadd.f32 %v1930, %v2079
        %v2100 = vadd.f32 %v1932, %v2081
        %v2102 = vperm.slane %v685, 0
        %v2104 = vadd.f32 %v2083, %v2102
        %v2105 = vadd.f32 %v2084, %v2102
        %v2106 = vadd.f32 %v2085, %v2102
        %v2107 = vadd.f32 %v2086, %v2102
        %v2108 = vadd.f32 %v2087, %v2102
        %v2109 = vadd.f32 %v2088, %v2102
        %v2110 = vadd.f32 %v2089, %v2102
        %v2111 = vadd.f32 %v2090, %v2102
        %v2112 = vadd.f32 %v2091, %v2102
        %v2113 = vadd.f32 %v2092, %v2102
        %v2114 = vadd.f32 %v2093, %v2102
        %v2115 = vadd.f32 %v2094, %v2102
        %v2116 = vadd.f32 %v2095, %v2102
        %v2117 = vadd.f32 %v2096, %v2102
        %v2118 = vadd.f32 %v2097, %v2102
        %v2119 = vadd.f32 %v2098, %v2102
        %v2120 = vadd.f32 %v2099, %v2102
        %v2121 = vadd.f32 %v2100, %v2102
        %v2122 = vld [vmem:[%s241] sm:$0xff]
        %v2123 = vld [vmem:[%s241 + $0x8] sm:$0xff]
        %v2124 = vadd.f32 %v2104, %v2122
        %v2125 = vadd.f32 %v2105, %v2123
        %v2126 = vmax.f32 %v2124, 0.0
        %v2127 = vmax.f32 %v2125, 0.0
        %2128 = vst [vmem:[%s278] sm:$0xff] %v2126
        %2129 = vst [vmem:[%s278 + $0x8] sm:$0xff] %v2127
        %v2130 = vld [vmem:[%s351] sm:$0xff]
        %v2131 = vld [vmem:[%s351 + $0x8] sm:$0xff]
        %vm2134 = vcmask 1041408
        %v2135 = vrot.slane %v2130, 6
        %v2136 = vrot.slane %v2131, 6
        %v2137 = vsel %vm2134, %v2135, %v2136
        %v2141 = vadd.f32 %v2106, %v2135
        %v2142 = vadd.f32 %v2107, %v2137
        %v2143 = vadd.f32 %v2108, %v2136
        %v2144 = vmax.f32 %v2141, 0.0
        %v2145 = vmax.f32 %v2142, 0.0
        %v2146 = vmax.f32 %v2143, 0.0
        %s2147 = scalar_lea.vmem %s278, 16 [#allocation10]
        %2148 = vst [vmem:[%s2147 - $0x2] sm:$0xfc] %v2144
        %2149 = vst [vmem:[%s2147 + $0x6] sm:$0xff] %v2145
        %2150 = vst [vmem:[%s2147 + $0xe] sm:$0x3] %v2146
        %v2151 = vld [vmem:[%s408] sm:$0xff]
        %v2152 = vld [vmem:[%s408 + $0x8] sm:$0xff]
        %vm2155 = vcmask 1043456
        %v2156 = vrot.slane %v2151, 4
        %v2157 = vrot.slane %v2152, 4
        %v2158 = vsel %vm2155, %v2156, %v2157
        %v2162 = vadd.f32 %v2108, %v2156
        %v2163 = vadd.f32 %v2109, %v2158
        %v2164 = vadd.f32 %v2110, %v2157
        %v2165 = vmax.f32 %v2162, 0.0
        %v2166 = vmax.f32 %v2163, 0.0
        %v2167 = vmax.f32 %v2164, 0.0
        %s2168 = scalar_lea.vmem %s278, 32 [#allocation10]
        %2169 = vst [vmem:[%s2168 - $0x4] sm:$0xf0] %v2165
        %2170 = vst [vmem:[%s2168 + $0x4] sm:$0xff] %v2166
        %2171 = vst [vmem:[%s2168 + $0xc] sm:$0xf] %v2167
        %v2172 = vld [vmem:[%s465] sm:$0xff]
        %v2173 = vld [vmem:[%s465 + $0x8] sm:$0xff]
        %vm2176 = vcmask 1045504
        %v2177 = vrot.slane %v2172, 2
        %v2178 = vrot.slane %v2173, 2
        %v2179 = vsel %vm2176, %v2177, %v2178
        %v2183 = vadd.f32 %v2110, %v2177
        %v2184 = vadd.f32 %v2111, %v2179
        %v2185 = vadd.f32 %v2112, %v2178
        %v2186 = vmax.f32 %v2183, 0.0
        %v2187 = vmax.f32 %v2184, 0.0
        %v2188 = vmax.f32 %v2185, 0.0
        %s2189 = scalar_lea.vmem %s278, 48 [#allocation10]
        %2190 = vst [vmem:[%s2189 - $0x6] sm:$0xc0] %v2186
        %2191 = vst [vmem:[%s2189 + $0x2] sm:$0xff] %v2187
        %2192 = vst [vmem:[%s2189 + $0xa] sm:$0x3f] %v2188
        %v2193 = vld [vmem:[%s514] sm:$0xff]
        %v2194 = vld [vmem:[%s514 + $0x8] sm:$0xff]
        %v2195 = vadd.f32 %v2113, %v2193
        %v2196 = vadd.f32 %v2114, %v2194
        %v2197 = vmax.f32 %v2195, 0.0
        %v2198 = vmax.f32 %v2196, 0.0
        %s2199 = scalar_lea.vmem %s278, 64 [#allocation10]
        %2200 = vst [vmem:[%s2199] sm:$0xff] %v2197
        %2201 = vst [vmem:[%s2199 + $0x8] sm:$0xff] %v2198
        %v2202 = vld [vmem:[%s558] sm:$0xff]
        %v2203 = vld [vmem:[%s558 + $0x8] sm:$0xff]
        %v2206 = vrot.slane %v2202, 6
        %v2207 = vrot.slane %v2203, 6
        %v2208 = vsel %vm2134, %v2206, %v2207
        %v2212 = vadd.f32 %v2115, %v2206
        %v2213 = vadd.f32 %v2116, %v2208
        %v2214 = vadd.f32 %v2117, %v2207
        %v2215 = vmax.f32 %v2212, 0.0
        %v2216 = vmax.f32 %v2213, 0.0
        %v2217 = vmax.f32 %v2214, 0.0
        %s2218 = scalar_lea.vmem %s278, 80 [#allocation10]
        %2219 = vst [vmem:[%s2218 - $0x2] sm:$0xfc] %v2215
        %2220 = vst [vmem:[%s2218 + $0x6] sm:$0xff] %v2216
        %2221 = vst [vmem:[%s2218 + $0xe] sm:$0x3] %v2217
        %v2222 = vld [vmem:[%s604] sm:$0xff]
        %v2223 = vld [vmem:[%s604 + $0x8] sm:$0xff]
        %v2226 = vrot.slane %v2222, 4
        %v2227 = vrot.slane %v2223, 4
        %v2228 = vsel %vm2155, %v2226, %v2227
        %v2232 = vadd.f32 %v2117, %v2226
        %v2233 = vadd.f32 %v2118, %v2228
        %v2234 = vadd.f32 %v2119, %v2227
        %v2235 = vmax.f32 %v2232, 0.0
        %v2236 = vmax.f32 %v2233, 0.0
        %v2237 = vmax.f32 %v2234, 0.0
        %s2238 = scalar_lea.vmem %s278, 96 [#allocation10]
        %2239 = vst [vmem:[%s2238 - $0x4] sm:$0xf0] %v2235
        %2240 = vst [vmem:[%s2238 + $0x4] sm:$0xff] %v2236
        %2241 = vst [vmem:[%s2238 + $0xc] sm:$0xf] %v2237
        %v2242 = vld [vmem:[%s650] sm:$0xff]
        %v2243 = vld [vmem:[%s650 + $0x8] sm:$0xff]
        %v2246 = vrot.slane %v2242, 2
        %v2247 = vrot.slane %v2243, 2
        %v2248 = vsel %vm2176, %v2246, %v2247
        %v2252 = vadd.f32 %v2119, %v2246
        %v2253 = vadd.f32 %v2120, %v2248
        %v2254 = vadd.f32 %v2121, %v2247
        %v2255 = vmax.f32 %v2252, 0.0
        %v2256 = vmax.f32 %v2253, 0.0
        %v2257 = vmax.f32 %v2254, 0.0
        %s2258 = scalar_lea.vmem %s278, 112 [#allocation10]
        %2259 = vst [vmem:[%s2258 - $0x6] sm:$0xc0] %v2255
        %2260 = vst [vmem:[%s2258 + $0x2] sm:$0xff] %v2256
        %2261 = vst [vmem:[%s2258 + $0xa] sm:$0x3f] %v2257
        %s2262 = sand.u32 %s141, 1
        %s2263 = scalar_lea.sflag [#allocation6], %s2262
        %s2264 = sand.u32 %s141, 1
        %s2265 = smul.addr %s2264, 128
        %s2266 = scalar_lea.vmem [#allocation10], %s2265
        // Predicated region
        $region53: #{tpu_custom_call.1} parent=39 // pred_check
          %p2267 = pneg %p151
        $region54: #{tpu_custom_call.1} parent=39 // pred_check_branch
          %2269 = sbr.rel (%p2267) target = $region56
        $region55: #{tpu_custom_call.1} parent=39 // pred_region
          %s2270 = smul.u32 8, %s23
          %2272 = vsyncadd %s2263, 0
          %s2273 = smul.addr %s2270, 2
          %s2274 = smul.addr %s2273, 8
          %s2275 = scalar_lea.hbm %s5, %s2274
          %s2276 = sshll.u32 %s2266, 4
          %s2277 = int_to_ptr.vmem [resolvable:$true] %s2276
          %s2278 = sshll.u32 %s2275, 4
          %s2279 = int_to_ptr.hbm [resolvable:$true] %s2278
          %2284 = dma.vmem_to_hbm [thread:$0]  %s2277, 2048, %s2279, %s2263, 128, 128, 8
        $region56: #{tpu_custom_call.1} parent=39 // pred_fallthru
          _
      $region40: #{tpu_custom_call.1} parent=5 // pred_fallthru
        _
      %p2285 = scmp.le.s32.totalorder 2, %s18
      // Predicated region
      $region57: #{tpu_custom_call.1} parent=5 // pred_check
        %p2286 = pneg %p2285
      $region58: #{tpu_custom_call.1} parent=5 // pred_check_branch
        %2288 = sbr.rel (%p2286) target = $region60
      $region59: #{tpu_custom_call.1} parent=5 // pred_region
        %s2289 = ssub.s32 %s18, 2
        // Predicated region
        $region61: #{tpu_custom_call.1} parent=59 // pred_check
          %p2290 = pneg %p157
        $region62: #{tpu_custom_call.1} parent=59 // pred_check_branch
          %2292 = sbr.rel (%p2290) target = $region64
        $region63: #{tpu_custom_call.1} parent=59 // pred_region
          %s2293 = sand.u32 %s142, 1
          %s2294 = scalar_lea.sflag [#allocation6], %s2293
          %s2295 = sand.u32 %s142, 1
          %s2296 = smul.addr %s2295, 128
          %s2297 = scalar_lea.vmem [#allocation10], %s2296
          %2299 = dma.done %s2294, 2048
        $region64: #{tpu_custom_call.1} parent=59 // pred_fallthru
          _
      $region60: #{tpu_custom_call.1} parent=5 // pred_fallthru
        _
    $region6: #{tpu_custom_call.1} parent=1 // loop_footer
      %s22 = sadd.s32 1, %s18
    $region7: #{tpu_custom_call.1} parent=1 // loop_footer_branch
      %17 = sbr.rel target = $region3
    $region8: #{tpu_custom_call.1} parent=1 // loop_exit
      _
    %2300 = vsyncpa [#allocation5], 1
    %s2301 = scalar_lea.sflag [#allocation5], 1
    %2302 = vsyncpa %s2301, 1
    %2303 = vsyncpa [#allocation8], 1
    %2304 = vsyncpa [#allocation6], 1
    %s2305 = scalar_lea.sflag [#allocation6], 1
    %2306 = vsyncpa %s2305, 1

</llo_original>
